<compile_context>
chip_gen: v7x
topology: tpu7x:2x2x1
jax: 0.10.0
libtpu: 0.0.40
codegen_flags: <defaults>
</compile_context>

<pallas_src>
import jax
import jax.numpy as jnp
from jax.experimental import pallas as pl
from jax.experimental.pallas import tpu as pltpu


def st_gcn_kernel(x_ref, a_ref, wcat_ref, wt_ref, b1_ref, shift_ref, o_ref):
    # Block shapes (all static):
    #   x_ref    : (1, V*T, Cin)     bf16   rows ordered (v, t), channels on lanes
    #   a_ref    : (V, K*V)          f32    a[w, k*V + v] = A[k, v, w]
    #   wcat_ref : (Cin, (K+1)*Cp)   bf16   [wg_0*s1 | ... | wg_{K-1}*s1 | wr*sr]
    #   wt_ref   : (kt, Cp, Cp)      bf16   temporal-conv weights (BN2 scale folded)
    #   b1_ref   : (V, 1, Cp)        f32    GCN bias folded through A + BN1 shift
    #   shift_ref: (1, Cp)           f32    TCN bias + BN2 shift + residual shift
    #   o_ref    : (1, V, T, Cp)     f32    lane-dense output block
    V, KV = a_ref.shape
    K = KV // V
    kt, Cp, _ = wt_ref.shape
    pad = (kt - 1) // 2
    VT = x_ref.shape[1]
    T = VT // V

    # ---- fused 1x1 convs (K GCN branches + residual): one MXU matmul ----
    x2d = x_ref[0]                                               # (V*T, Cin) bf16
    zall = jnp.dot(x2d, wcat_ref[...],
                   preferred_element_type=jnp.float32)           # (V*T, (K+1)*Cp) f32

    r2d = zall[:, K * Cp:]                                       # residual branch (V*T, Cp)

    # ---- graph contraction: one 2-D matmul over the stacked (k, v) axis ----
    # zcat[(k*V + v), (t*Cp + c)] = zall[v*T + t, k*Cp + c]
    zcat = jnp.concatenate(
        [zall[:, k * Cp:(k + 1) * Cp].reshape(V, T * Cp) for k in range(K)],
        axis=0)                                                  # (K*V, T*Cp)
    g = jnp.dot(a_ref[...], zcat,
                preferred_element_type=jnp.float32)              # (V, T*Cp) f32
    g = g.reshape(V, T, Cp)

    # ---- BN1 (folded) + ReLU ----
    y = jnp.maximum(g + b1_ref[...], 0.0)                        # (V, T, Cp) f32

    # ---- temporal (kt, 1) conv, stride 1, zero halo along T, BN2 folded ----
    if pad > 0:
        zh = jnp.zeros((V, pad, Cp), jnp.float32)
        ypad = jnp.concatenate([zh, y, zh], axis=1)              # (V, T + 2*pad, Cp)
    else:
        ypad = y
    acc = jnp.zeros((V * T, Cp), jnp.float32)
    for dt in range(kt):
        win = ypad[:, dt:dt + T, :].reshape(V * T, Cp).astype(jnp.bfloat16)
        acc = acc + jnp.dot(win, wt_ref[dt],
                            preferred_element_type=jnp.float32)

    # ---- residual add + folded shifts + final ReLU ----
    out = jnp.maximum(acc + r2d + shift_ref[...], 0.0)           # (V*T, Cp)
    o_ref[0] = out.reshape(V, T, Cp)


def _fold_bn(gamma, beta, mean, var, eps=1e-5):
    s = gamma / jnp.sqrt(var + eps)
    return s, beta - mean * s


def st_gcn_forward(x_nchw, A, p, residual=True):
    """x_nchw: (N, Cin, T, V) f32, A: (K, V, V) f32. Returns (out NCHW f32, A)."""
    N, Cin, T, V = x_nchw.shape
    K, _, Cout = p["wg"].shape
    kt = p["wt"].shape[0]
    # TODO(synk): temporal stride != 1 (strided TCN + strided residual) not implemented.
    Cp = ((Cout + 127) // 128) * 128            # lane-dense padded out-channel width

    def padc(a):                                # zero-pad last axis Cout -> Cp
        return jnp.pad(a, [(0, 0)] * (a.ndim - 1) + [(0, Cp - Cout)])

    s1, h1 = _fold_bn(p["g1"], p["b1"], p["m1"], p["v1"])
    s2, h2 = _fold_bn(p["g2"], p["b2"], p["m2"], p["v2"])

    # Residual branch folded to:  r = x @ wr_f + shift_r
    if not residual:
        wr_f = jnp.zeros((Cin, Cout), jnp.float32)
        shift_r = jnp.zeros((Cout,), jnp.float32)
    elif Cin == Cout:
        wr_f = jnp.eye(Cin, dtype=jnp.float32)          # identity residual
        shift_r = jnp.zeros((Cout,), jnp.float32)
    else:
        sr, hr = _fold_bn(p["gr"], p["er"], p["mr"], p["vr"])
        wr_f = p["wr"] * sr[None, :]
        shift_r = p["br"] * sr + hr

    # Fused 1x1 weight: [wg_0*s1 | ... | wg_{K-1}*s1 | wr_f], each padded to Cp lanes.
    wg_f = p["wg"] * s1[None, None, :]                          # (K, Cin, Cout)
    wcat = jnp.concatenate([padc(wg_f[k]) for k in range(K)] + [padc(wr_f)],
                           axis=1).astype(jnp.bfloat16)         # (Cin, (K+1)*Cp)

    # BN2-scale folded temporal-conv weight, padded.
    wt_f = p["wt"] * s2[None, None, :]                          # (kt, Cout, Cout)
    wt_p = jnp.pad(wt_f, ((0, 0), (0, Cp - Cout), (0, Cp - Cout))).astype(jnp.bfloat16)

    # GCN conv bias folded through the A contraction and BN1:  b1[w, c].
    asum = jnp.sum(A, axis=1)                                   # (K, V): sum_v A[k, v, w]
    b1 = jnp.einsum("kc,kw->wc", p["bg"] * s1[None, :], asum) + h1[None, :]
    b1_p = padc(b1).reshape(V, 1, Cp).astype(jnp.float32)       # broadcasts over T

    # Remaining per-channel shift, applied once after the residual add.
    shift = p["bt"] * s2 + h2 + shift_r
    shift_p = padc(shift.reshape(1, Cout)).astype(jnp.float32)  # (1, Cp)

    # A transposed + k-stacked once: a_lhs[w, k*V + v] = A[k, v, w].  Constant
    # index_map -> DMA'd once; no T-broadcast copy needed with (v, t) row order.
    a_lhs = jnp.transpose(A, (2, 0, 1)).reshape(V, K * V).astype(jnp.float32)

    # Activations: rows = (v, t), channels on lanes, bf16 to halve HBM traffic.
    x_rows = jnp.transpose(x_nchw, (0, 3, 2, 1)).reshape(N, V * T, Cin)
    x_rows = x_rows.astype(jnp.bfloat16)

    out = pl.pallas_call(
        st_gcn_kernel,
        out_shape=jax.ShapeDtypeStruct((N, V, T, Cp), jnp.float32),
        grid=(N,),
        in_specs=[
            pl.BlockSpec((1, V * T, Cin), lambda n: (n, 0, 0)),
            pl.BlockSpec((V, K * V), lambda n: (0, 0)),
            pl.BlockSpec((Cin, (K + 1) * Cp), lambda n: (0, 0)),
            pl.BlockSpec((kt, Cp, Cp), lambda n: (0, 0, 0)),
            pl.BlockSpec((V, 1, Cp), lambda n: (0, 0, 0)),
            pl.BlockSpec((1, Cp), lambda n: (0, 0)),
        ],
        out_specs=pl.BlockSpec((1, V, T, Cp), lambda n: (n, 0, 0, 0)),
        compiler_params=pltpu.CompilerParams(dimension_semantics=("parallel",)),
    )(x_rows, a_lhs, wcat, wt_p, b1_p, shift_p)

    out = out[..., :Cout]                                       # drop lane padding
    return jnp.transpose(out, (0, 3, 2, 1)), A                  # (N, V, T, C) -> NCHW


def ref_forward(x, A, p, eps=1e-5):
    """Pure-JAX f32 reference matching the PyTorch module (inference mode)."""
    N, Cin, T, V = x.shape
    K, _, Cout = p["wg"].shape
    kt = p["wt"].shape[0]
    pad = (kt - 1) // 2

    def bn(t, gamma, beta, mean, var):
        return ((t - mean[None, :, None, None]) / jnp.sqrt(var[None, :, None, None] + eps)
                * gamma[None, :, None, None] + beta[None, :, None, None])

    z = jnp.einsum("nctv,kcd->nkdtv", x, p["wg"]) + p["bg"][None, :, :, None, None]
    g = jnp.einsum("nkdtv,kvw->ndtw", z, A)
    y = jnp.maximum(bn(g, p["g1"], p["b1"], p["m1"], p["v1"]), 0.0)
    ypad = jnp.pad(y, ((0, 0), (0, 0), (pad, pad), (0, 0)))
    tc = jnp.zeros((N, Cout, T, V), jnp.float32)
    for dt in range(kt):
        tc = tc + jnp.einsum("nctv,cd->ndtv", ypad[:, :, dt:dt + T, :], p["wt"][dt])
    tc = bn(tc + p["bt"][None, :, None, None], p["g2"], p["b2"], p["m2"], p["v2"])
    r = jnp.einsum("nctv,cd->ndtv", x, p["wr"]) + p["br"][None, :, None, None]
    r = bn(r, p["gr"], p["er"], p["mr"], p["vr"])
    return jnp.maximum(tc + r, 0.0), A


if __name__ == "__main__":
    # batch=2, in_channels=4, out_channels=8, T=8, V=16, kernel_size=(3, 2), stride=1.
    N, Cin, Cout, T, V, K, kt = 2, 4, 8, 8, 16, 2, 3

    key = jax.random.PRNGKey(0)
    ks = jax.random.split(key, 20)
    p = {
        "wg": jax.random.normal(ks[0], (K, Cin, Cout), jnp.float32) * 0.1,
        "bg": jax.random.normal(ks[1], (K, Cout), jnp.float32) * 0.1,
        "g1": 1.0 + 0.1 * jax.random.normal(ks[2], (Cout,), jnp.float32),
        "b1": 0.1 * jax.random.normal(ks[3], (Cout,), jnp.float32),
        "m1": 0.1 * jax.random.normal(ks[4], (Cout,), jnp.float32),
        "v1": jax.random.uniform(ks[5], (Cout,), jnp.float32, 0.5, 1.5),
        "wt": jax.random.normal(ks[6], (kt, Cout, Cout), jnp.float32) * 0.1,
        "bt": jax.random.normal(ks[7], (Cout,), jnp.float32) * 0.1,
        "g2": 1.0 + 0.1 * jax.random.normal(ks[8], (Cout,), jnp.float32),
        "b2": 0.1 * jax.random.normal(ks[9], (Cout,), jnp.float32),
        "m2": 0.1 * jax.random.normal(ks[10], (Cout,), jnp.float32),
        "v2": jax.random.uniform(ks[11], (Cout,), jnp.float32, 0.5, 1.5),
        "wr": jax.random.normal(ks[12], (Cin, Cout), jnp.float32) * 0.1,
        "br": jax.random.normal(ks[13], (Cout,), jnp.float32) * 0.1,
        "gr": 1.0 + 0.1 * jax.random.normal(ks[14], (Cout,), jnp.float32),
        "er": 0.1 * jax.random.normal(ks[15], (Cout,), jnp.float32),
        "mr": 0.1 * jax.random.normal(ks[16], (Cout,), jnp.float32),
        "vr": jax.random.uniform(ks[17], (Cout,), jnp.float32, 0.5, 1.5),
    }

    x = jax.random.normal(ks[18], (N, Cin, T, V), jnp.float32)        # NCHW
    A = jax.random.uniform(ks[19], (K, V, V), jnp.float32)

    out, A_out = st_gcn_forward(x, A, p)
    out = jax.block_until_ready(out)

    ref, _ = ref_forward(x, A, p)
    assert out.shape == (N, Cout, T, V)
    max_err = float(jnp.max(jnp.abs(out - ref)))
    # bf16 matmuls with f32 accumulation vs. a pure-f32 reference.
    assert jnp.allclose(out, ref, atol=5e-2, rtol=5e-2), max_err

    print("KERNEL_OK")
</pallas_src>

<mosaic_0001>
module attributes {stable_mosaic.version = 11 : i64} {
  func.func @st_gcn_kernel(%arg0: i32, %arg1: memref<1x128x4xbf16, #tpu.memory_space<vmem>>, %arg2: memref<16x32xf32, #tpu.memory_space<vmem>>, %arg3: memref<4x384xbf16, #tpu.memory_space<vmem>>, %arg4: memref<3x128x128xbf16, #tpu.memory_space<vmem>>, %arg5: memref<16x1x128xf32, #tpu.memory_space<vmem>>, %arg6: memref<1x128xf32, #tpu.memory_space<vmem>>, %arg7: memref<1x16x8x128xf32, #tpu.memory_space<vmem>>) attributes {dimension_semantics = [#tpu.dimension_semantics<parallel>], iteration_bounds = array<i64: 2>, scalar_prefetch = 0 : i64, scratch_operands = 0 : i64, tpu.core_type = #tpu.core_type<tc>, window_params = [{transform_indices = @transform_0, window_bounds = array<i64: 1, 128, 4>}, {pipeline_mode = #tpu.pipeline_mode<synchronous>, transform_indices = @transform_1, window_bounds = array<i64: 16, 32>}, {pipeline_mode = #tpu.pipeline_mode<synchronous>, transform_indices = @transform_2, window_bounds = array<i64: 4, 384>}, {pipeline_mode = #tpu.pipeline_mode<synchronous>, transform_indices = @transform_3, window_bounds = array<i64: 3, 128, 128>}, {pipeline_mode = #tpu.pipeline_mode<synchronous>, transform_indices = @transform_4, window_bounds = array<i64: 16, 1, 128>}, {pipeline_mode = #tpu.pipeline_mode<synchronous>, transform_indices = @transform_5, window_bounds = array<i64: 1, 128>}, {transform_indices = @transform_6, window_bounds = array<i64: 1, 16, 8, 128>}]} {
    %c0 = arith.constant 0 : index
    %c0_0 = arith.constant 0 : index
    %c0_1 = arith.constant 0 : index
    %0 = vector.load %arg1[%c0, %c0_0, %c0_1] : memref<1x128x4xbf16, #tpu.memory_space<vmem>>, vector<1x128x4xbf16>
    %1 = vector.shape_cast %0 : vector<1x128x4xbf16> to vector<128x4xbf16>
    %c0_2 = arith.constant 0 : index
    %c0_3 = arith.constant 0 : index
    %2 = vector.load %arg3[%c0_2, %c0_3] : memref<4x384xbf16, #tpu.memory_space<vmem>>, vector<4x384xbf16>
    %cst = arith.constant dense<0.000000e+00> : vector<128x384xf32>
    %3 = tpu.matmul %1, %2, %cst {dimension_numbers = #tpu.dot_dimension_numbers<[1], [0], [0], [1], [0, 0, 1, 1], [], []>} : vector<128x4xbf16>, vector<4x384xbf16>, vector<128x384xf32> -> vector<128x384xf32>
    %4 = vector.extract_strided_slice %3 {offsets = [0, 256], sizes = [128, 128], strides = [1, 1]} : vector<128x384xf32> to vector<128x128xf32>
    %5 = vector.extract_strided_slice %3 {offsets = [0, 0], sizes = [128, 128], strides = [1, 1]} : vector<128x384xf32> to vector<128x128xf32>
    %6 = vector.shape_cast %5 : vector<128x128xf32> to vector<16x1024xf32>
    %7 = vector.extract_strided_slice %3 {offsets = [0, 128], sizes = [128, 128], strides = [1, 1]} : vector<128x384xf32> to vector<128x128xf32>
    %8 = vector.shape_cast %7 : vector<128x128xf32> to vector<16x1024xf32>
    %9 = tpu.concatenate %6, %8 in 0 : vector<16x1024xf32>, vector<16x1024xf32> -> vector<32x1024xf32>
    %c0_4 = arith.constant 0 : index
    %c0_5 = arith.constant 0 : index
    %10 = vector.load %arg2[%c0_4, %c0_5] : memref<16x32xf32, #tpu.memory_space<vmem>>, vector<16x32xf32>
    %cst_6 = arith.constant dense<0.000000e+00> : vector<16x1024xf32>
    %11 = tpu.matmul %10, %9, %cst_6 {dimension_numbers = #tpu.dot_dimension_numbers<[1], [0], [0], [1], [0, 0, 1, 1], [], []>} : vector<16x32xf32>, vector<32x1024xf32>, vector<16x1024xf32> -> vector<16x1024xf32>
    %12 = vector.shape_cast %11 : vector<16x1024xf32> to vector<16x8x128xf32>
    %c0_7 = arith.constant 0 : index
    %c0_8 = arith.constant 0 : index
    %c0_9 = arith.constant 0 : index
    %13 = vector.load %arg5[%c0_7, %c0_8, %c0_9] : memref<16x1x128xf32, #tpu.memory_space<vmem>>, vector<16x1x128xf32>
    %14 = vector.broadcast %13 : vector<16x1x128xf32> to vector<16x8x128xf32>
    %15 = arith.addf %12, %14 : vector<16x8x128xf32>
    %cst_10 = arith.constant 0.000000e+00 : f32
    %16 = vector.broadcast %cst_10 : f32 to vector<16x8x128xf32>
    %17 = arith.maximumf %15, %16 : vector<16x8x128xf32>
    %cst_11 = arith.constant 0.000000e+00 : f32
    %18 = vector.broadcast %cst_11 : f32 to vector<16x1x128xf32>
    %19 = tpu.concatenate %18, %17, %18 in 1 : vector<16x1x128xf32>, vector<16x8x128xf32>, vector<16x1x128xf32> -> vector<16x10x128xf32>
    %cst_12 = arith.constant 0.000000e+00 : f32
    %20 = vector.broadcast %cst_12 : f32 to vector<128x128xf32>
    %21 = vector.extract_strided_slice %19 {offsets = [0, 0, 0], sizes = [16, 8, 128], strides = [1, 1, 1]} : vector<16x10x128xf32> to vector<16x8x128xf32>
    %22 = vector.shape_cast %21 : vector<16x8x128xf32> to vector<128x128xf32>
    %23 = arith.truncf %22 : vector<128x128xf32> to vector<128x128xbf16>
    %c0_13 = arith.constant 0 : index
    %c0_14 = arith.constant 0 : index
    %c0_15 = arith.constant 0 : index
    %24 = vector.load %arg4[%c0_13, %c0_14, %c0_15] : memref<3x128x128xbf16, #tpu.memory_space<vmem>>, vector<1x128x128xbf16>
    %25 = vector.shape_cast %24 : vector<1x128x128xbf16> to vector<128x128xbf16>
    %cst_16 = arith.constant dense<0.000000e+00> : vector<128x128xf32>
    %26 = tpu.matmul %23, %25, %cst_16 {dimension_numbers = #tpu.dot_dimension_numbers<[1], [0], [0], [1], [0, 0, 1, 1], [], []>} : vector<128x128xbf16>, vector<128x128xbf16>, vector<128x128xf32> -> vector<128x128xf32>
    %27 = arith.addf %20, %26 : vector<128x128xf32>
    %28 = vector.extract_strided_slice %19 {offsets = [0, 1, 0], sizes = [16, 8, 128], strides = [1, 1, 1]} : vector<16x10x128xf32> to vector<16x8x128xf32>
    %29 = vector.shape_cast %28 : vector<16x8x128xf32> to vector<128x128xf32>
    %30 = arith.truncf %29 : vector<128x128xf32> to vector<128x128xbf16>
    %c1 = arith.constant 1 : index
    %c0_17 = arith.constant 0 : index
    %c0_18 = arith.constant 0 : index
    %31 = vector.load %arg4[%c1, %c0_17, %c0_18] : memref<3x128x128xbf16, #tpu.memory_space<vmem>>, vector<1x128x128xbf16>
    %32 = vector.shape_cast %31 : vector<1x128x128xbf16> to vector<128x128xbf16>
    %cst_19 = arith.constant dense<0.000000e+00> : vector<128x128xf32>
    %33 = tpu.matmul %30, %32, %cst_19 {dimension_numbers = #tpu.dot_dimension_numbers<[1], [0], [0], [1], [0, 0, 1, 1], [], []>} : vector<128x128xbf16>, vector<128x128xbf16>, vector<128x128xf32> -> vector<128x128xf32>
    %34 = arith.addf %27, %33 : vector<128x128xf32>
    %35 = vector.extract_strided_slice %19 {offsets = [0, 2, 0], sizes = [16, 8, 128], strides = [1, 1, 1]} : vector<16x10x128xf32> to vector<16x8x128xf32>
    %36 = vector.shape_cast %35 : vector<16x8x128xf32> to vector<128x128xf32>
    %37 = arith.truncf %36 : vector<128x128xf32> to vector<128x128xbf16>
    %c2 = arith.constant 2 : index
    %c0_20 = arith.constant 0 : index
    %c0_21 = arith.constant 0 : index
    %38 = vector.load %arg4[%c2, %c0_20, %c0_21] : memref<3x128x128xbf16, #tpu.memory_space<vmem>>, vector<1x128x128xbf16>
    %39 = vector.shape_cast %38 : vector<1x128x128xbf16> to vector<128x128xbf16>
    %cst_22 = arith.constant dense<0.000000e+00> : vector<128x128xf32>
    %40 = tpu.matmul %37, %39, %cst_22 {dimension_numbers = #tpu.dot_dimension_numbers<[1], [0], [0], [1], [0, 0, 1, 1], [], []>} : vector<128x128xbf16>, vector<128x128xbf16>, vector<128x128xf32> -> vector<128x128xf32>
    %41 = arith.addf %34, %40 : vector<128x128xf32>
    %42 = arith.addf %41, %4 : vector<128x128xf32>
    %c0_23 = arith.constant 0 : index
    %c0_24 = arith.constant 0 : index
    %43 = vector.load %arg6[%c0_23, %c0_24] : memref<1x128xf32, #tpu.memory_space<vmem>>, vector<1x128xf32>
    %44 = vector.broadcast %43 : vector<1x128xf32> to vector<128x128xf32>
    %45 = arith.addf %42, %44 : vector<128x128xf32>
    %cst_25 = arith.constant 0.000000e+00 : f32
    %46 = vector.broadcast %cst_25 : f32 to vector<128x128xf32>
    %47 = arith.maximumf %45, %46 : vector<128x128xf32>
    %48 = vector.shape_cast %47 : vector<128x128xf32> to vector<16x8x128xf32>
    %c0_26 = arith.constant 0 : index
    %c0_27 = arith.constant 0 : index
    %c0_28 = arith.constant 0 : index
    %c0_29 = arith.constant 0 : index
    %49 = vector.load %arg7[%c0_26, %c0_27, %c0_28, %c0_29] : memref<1x16x8x128xf32, #tpu.memory_space<vmem>>, vector<1x16x8x128xf32>
    %50 = vector.shape_cast %49 : vector<1x16x8x128xf32> to vector<16x8x128xf32>
    %51 = vector.shape_cast %48 : vector<16x8x128xf32> to vector<1x16x8x128xf32>
    tpu.vector_store %arg7[%c0_26, %c0_27, %c0_28, %c0_29], %51 {strides = array<i32>} : memref<1x16x8x128xf32, #tpu.memory_space<vmem>>, vector<1x16x8x128xf32>,
    return
  }
  func.func @transform_0(%arg0: i32) -> (i32, i32, i32) {
    %c0_i32 = arith.constant 0 : i32
    %c0_i32_0 = arith.constant 0 : i32
    %c0_i32_1 = arith.constant 0 : i32
    return %arg0, %c0_i32, %c0_i32_0 : i32, i32, i32
  }
  func.func @transform_1(%arg0: i32) -> (i32, i32) {
    %c0_i32 = arith.constant 0 : i32
    %c0_i32_0 = arith.constant 0 : i32
    %c0_i32_1 = arith.constant 0 : i32
    return %c0_i32, %c0_i32_0 : i32, i32
  }
  func.func @transform_2(%arg0: i32) -> (i32, i32) {
    %c0_i32 = arith.constant 0 : i32
    %c0_i32_0 = arith.constant 0 : i32
    %c0_i32_1 = arith.constant 0 : i32
    return %c0_i32, %c0_i32_0 : i32, i32
  }
  func.func @transform_3(%arg0: i32) -> (i32, i32, i32) {
    %c0_i32 = arith.constant 0 : i32
    %c0_i32_0 = arith.constant 0 : i32
    %c0_i32_1 = arith.constant 0 : i32
    %c0_i32_2 = arith.constant 0 : i32
    return %c0_i32, %c0_i32_0, %c0_i32_1 : i32, i32, i32
  }
  func.func @transform_4(%arg0: i32) -> (i32, i32, i32) {
    %c0_i32 = arith.constant 0 : i32
    %c0_i32_0 = arith.constant 0 : i32
    %c0_i32_1 = arith.constant 0 : i32
    %c0_i32_2 = arith.constant 0 : i32
    return %c0_i32, %c0_i32_0, %c0_i32_1 : i32, i32, i32
  }
  func.func @transform_5(%arg0: i32) -> (i32, i32) {
    %c0_i32 = arith.constant 0 : i32
    %c0_i32_0 = arith.constant 0 : i32
    %c0_i32_1 = arith.constant 0 : i32
    return %c0_i32, %c0_i32_0 : i32, i32
  }
  func.func @transform_6(%arg0: i32) -> (i32, i32, i32, i32) {
    %c0_i32 = arith.constant 0 : i32
    %c0_i32_0 = arith.constant 0 : i32
    %c0_i32_1 = arith.constant 0 : i32
    %c0_i32_2 = arith.constant 0 : i32
    return %arg0, %c0_i32, %c0_i32_0, %c0_i32_1 : i32, i32, i32, i32
  }
}

</mosaic_0001>

<llo_original>
// kernel: tpu_custom_call.1
$region0: #{tpu_custom_call.1}
  #allocation0 [shape = 'u32[]', space=smem, size = 0x4, offset = 0x4, fixed_abs, tag = 'smem constant byte address 0x4 - core index']
  #allocation1 [shape = 'u32[144,128]{1,0:T(1,128)}', space=vmem, size = 0x12000, scoped, tag = 'internal scratch']
  %s0 = inlined_call_operand.vmem [shape: bf16[2,128,4], index: 0, kind: input, shape index: {}]
  %s1 = inlined_call_operand.vmem [shape: f32[16,32], index: 1, kind: input, shape index: {}]
  %s2 = inlined_call_operand.vmem [shape: bf16[4,384], index: 2, kind: input, shape index: {}]
  %s3 = inlined_call_operand.hbm [shape: bf16[3,128,128], index: 3, kind: input, shape index: {}]
  %s4 = inlined_call_operand.vmem [shape: f32[16,1,128], index: 4, kind: input, shape index: {}]
  %s5 = inlined_call_operand.vmem [shape: f32[1,128], index: 5, kind: input, shape index: {}]
  %s6 = inlined_call_operand.hbm [shape: f32[2,16,8,128], index: 6, kind: output, shape index: {}]
  %s7 = sld [smem:[#allocation0]]
  $region61: #{tpu_custom_call.1} parent=0
    _
  %s9 = ssub.s32 1, %s7
  %s10 = scalar_select 0, %s9, %s7
  $region1: #{tpu_custom_call.1} parent=0
    #allocation2 [shape = 'u8[98304]{0}', space=vmem, size = 0x18000, scoped, tag = 'input window, operand 3, single buffered']
    #allocation3 [shape = 's32[2]{0}', space=sflag, size = 0x8, scoped, tag = 'scoped memory for tpu_custom_call.1']
    #allocation4 [shape = 's32[2]{0}', space=sflag, size = 0x8, scoped, tag = 'scoped memory for tpu_custom_call.1']
    #allocation5 [shape = 'u8[131072]{0}', space=vmem, size = 0x20000, scoped, tag = 'output window, operand 0']
    %11 = vsyncpa [#allocation3], 0
    %12 = vsyncpa [#allocation4], 0
    %s13 = scalar_lea.sflag [#allocation4], 1
    %14 = vsyncpa %s13, 0
    loop: start=0, step=1, limit=4
    $region2: #{tpu_custom_call.1} parent=1 // loop_pre_header
      _
    $region3: #{tpu_custom_call.1} parent=1 // loop_header
      %s16 = sphi 0, %s20
      %p17 = scmp.ge.s32.totalorder %s16, 4
      %s26 = sphi 0, %s28
      %s29 = sphi 0, %s26
      %s30 = sphi 0, %s29
      %s46 = sphi 0, %s30
      %s50 = sphi 0, %s50
      %s52 = sphi 0, %s50
      %s53 = sphi 0, %s52
      %s67 = sphi 0, %s53
      %s71 = sphi 0, %s71
      %s73 = sphi 0, %s71
      %s74 = sphi 0, %s73
      %s88 = sphi 0, %s74
      %s92 = sphi 0, %s92
      %s94 = sphi 0, %s92
      %s95 = sphi 0, %s94
      %s109 = sphi 0, %s95
      %s113 = sphi 0, %s113
      %s115 = sphi 0, %s113
      %s116 = sphi 0, %s115
      %s130 = sphi 0, %s116
      %s134 = sphi 0, %s134
      %s136 = sphi 0, %s134
      %s137 = sphi 0, %s136
      %s151 = sphi 0, %s137
      %s157 = sphi 0, %s159
      %s160 = sphi 0, %s157
      %s161 = sphi 0, %s160
      %s177 = sphi 0, %s161
    $region4: #{tpu_custom_call.1} parent=1 // loop_header_branch
      %19 = sbr.rel (%p17) target = $region8
    $region5: #{tpu_custom_call.1} parent=1 // loop_body
      %s21 = ssub.s32 %s16, 1
      %s22 = ssub.s32 %s16, 2
      %s23 = sadd.s32 %s16, 1
      %s24 = ssub.s32 %s16, %s23
      %p25 = scmp.eq.s32.totalorder %s24, 0
      %s27 = sadd.s32 %s26, 1
      %s28 = scalar_select %p25, %s26, %s27
      %p31 = pneg %p25
      %p32 = scmp.eq.s32.totalorder %s16, 1
      %p33 = por %p31, %p32
      %p34 = scmp.ne.s32.totalorder %s26, %s29
      %p35 = scmp.eq.s32.totalorder %s16, 0
      %p36 = por %p34, %p35
      %p37 = scmp.ne.s32.totalorder %s26, %s29
      %p38 = scmp.eq.s32.totalorder %s21, 1
      %p39 = por %p37, %p38
      %p40 = scmp.ne.s32.totalorder %s29, %s30
      %p41 = scmp.eq.s32.totalorder %s21, 0
      %p42 = por %p40, %p41
      %p43 = scmp.ne.s32.totalorder %s29, %s30
      %p44 = scmp.eq.s32.totalorder %s22, 1
      %p45 = por %p43, %p44
      %p47 = scmp.ne.s32.totalorder %s30, %s46
      %p48 = scmp.eq.s32.totalorder %s22, 0
      %p49 = por %p47, %p48
      %s51 = sadd.s32 %s50, 1
      %p54 = scmp.eq.s32.totalorder %s16, 1
      %p55 = scmp.ne.s32.totalorder %s50, %s52
      %p56 = scmp.eq.s32.totalorder %s16, 0
      %p57 = por %p55, %p56
      %p58 = scmp.ne.s32.totalorder %s50, %s52
      %p59 = scmp.eq.s32.totalorder %s21, 1
      %p60 = por %p58, %p59
      %p61 = scmp.ne.s32.totalorder %s52, %s53
      %p62 = scmp.eq.s32.totalorder %s21, 0
      %p63 = por %p61, %p62
      %p64 = scmp.ne.s32.totalorder %s52, %s53
      %p65 = scmp.eq.s32.totalorder %s22, 1
      %p66 = por %p64, %p65
      %p68 = scmp.ne.s32.totalorder %s53, %s67
      %p69 = scmp.eq.s32.totalorder %s22, 0
      %p70 = por %p68, %p69
      %s72 = sadd.s32 %s71, 1
      %p75 = scmp.eq.s32.totalorder %s16, 1
      %p76 = scmp.ne.s32.totalorder %s71, %s73
      %p77 = scmp.eq.s32.totalorder %s16, 0
      %p78 = por %p76, %p77
      %p79 = scmp.ne.s32.totalorder %s71, %s73
      %p80 = scmp.eq.s32.totalorder %s21, 1
      %p81 = por %p79, %p80
      %p82 = scmp.ne.s32.totalorder %s73, %s74
      %p83 = scmp.eq.s32.totalorder %s21, 0
      %p84 = por %p82, %p83
      %p85 = scmp.ne.s32.totalorder %s73, %s74
      %p86 = scmp.eq.s32.totalorder %s22, 1
      %p87 = por %p85, %p86
      %p89 = scmp.ne.s32.totalorder %s74, %s88
      %p90 = scmp.eq.s32.totalorder %s22, 0
      %p91 = por %p89, %p90
      %s93 = sadd.s32 %s92, 1
      %p96 = scmp.eq.s32.totalorder %s16, 1
      %p97 = scmp.ne.s32.totalorder %s92, %s94
      %p98 = scmp.eq.s32.totalorder %s16, 0
      %p99 = por %p97, %p98
      %p100 = scmp.ne.s32.totalorder %s92, %s94
      %p101 = scmp.eq.s32.totalorder %s21, 1
      %p102 = por %p100, %p101
      %p103 = scmp.ne.s32.totalorder %s94, %s95
      %p104 = scmp.eq.s32.totalorder %s21, 0
      %p105 = por %p103, %p104
      %p106 = scmp.ne.s32.totalorder %s94, %s95
      %p107 = scmp.eq.s32.totalorder %s22, 1
      %p108 = por %p106, %p107
      %p110 = scmp.ne.s32.totalorder %s95, %s109
      %p111 = scmp.eq.s32.totalorder %s22, 0
      %p112 = por %p110, %p111
      %s114 = sadd.s32 %s113, 1
      %p117 = scmp.eq.s32.totalorder %s16, 1
      %p118 = scmp.ne.s32.totalorder %s113, %s115
      %p119 = scmp.eq.s32.totalorder %s16, 0
      %p120 = por %p118, %p119
      %p121 = scmp.ne.s32.totalorder %s113, %s115
      %p122 = scmp.eq.s32.totalorder %s21, 1
      %p123 = por %p121, %p122
      %p124 = scmp.ne.s32.totalorder %s115, %s116
      %p125 = scmp.eq.s32.totalorder %s21, 0
      %p126 = por %p124, %p125
      %p127 = scmp.ne.s32.totalorder %s115, %s116
      %p128 = scmp.eq.s32.totalorder %s22, 1
      %p129 = por %p127, %p128
      %p131 = scmp.ne.s32.totalorder %s116, %s130
      %p132 = scmp.eq.s32.totalorder %s22, 0
      %p133 = por %p131, %p132
      %s135 = sadd.s32 %s134, 1
      %p138 = scmp.eq.s32.totalorder %s16, 1
      %p139 = scmp.ne.s32.totalorder %s134, %s136
      %p140 = scmp.eq.s32.totalorder %s16, 0
      %p141 = por %p139, %p140
      %p142 = scmp.ne.s32.totalorder %s134, %s136
      %p143 = scmp.eq.s32.totalorder %s21, 1
      %p144 = por %p142, %p143
      %p145 = scmp.ne.s32.totalorder %s136, %s137
      %p146 = scmp.eq.s32.totalorder %s21, 0
      %p147 = por %p145, %p146
      %p148 = scmp.ne.s32.totalorder %s136, %s137
      %p149 = scmp.eq.s32.totalorder %s22, 1
      %p150 = por %p148, %p149
      %p152 = scmp.ne.s32.totalorder %s137, %s151
      %p153 = scmp.eq.s32.totalorder %s22, 0
      %p154 = por %p152, %p153
      %s155 = ssub.s32 %s16, %s23
      %p156 = scmp.eq.s32.totalorder %s155, 0
      %s158 = sadd.s32 %s157, 1
      %s159 = scalar_select %p156, %s157, %s158
      %p162 = pneg %p156
      %p163 = scmp.eq.s32.totalorder %s16, 1
      %p164 = por %p162, %p163
      %p165 = scmp.ne.s32.totalorder %s157, %s160
      %p166 = scmp.eq.s32.totalorder %s16, 0
      %p167 = por %p165, %p166
      %p168 = scmp.ne.s32.totalorder %s157, %s160
      %p169 = scmp.eq.s32.totalorder %s21, 1
      %p170 = por %p168, %p169
      %p171 = scmp.ne.s32.totalorder %s160, %s161
      %p172 = scmp.eq.s32.totalorder %s21, 0
      %p173 = por %p171, %p172
      %p174 = scmp.ne.s32.totalorder %s160, %s161
      %p175 = scmp.eq.s32.totalorder %s22, 1
      %p176 = por %p174, %p175
      %p178 = scmp.ne.s32.totalorder %s161, %s177
      %p179 = scmp.eq.s32.totalorder %s22, 0
      %p180 = por %p178, %p179
      %p181 = scmp.le.s32.totalorder 1, %s16
      %p182 = scmp.lt.s32.totalorder %s16, 3
      %p183 = pnand %p181, %p182
      %p184 = pneg %p183
      // Predicated region
      $region9: #{tpu_custom_call.1} parent=5 // pred_check
        _
      $region10: #{tpu_custom_call.1} parent=5 // pred_check_branch
        %186 = sbr.rel (%p183) target = $region12
      $region11: #{tpu_custom_call.1} parent=5 // pred_region
        %s187 = ssub.s32 %s16, 1
        // Predicated region
        $region13: #{tpu_custom_call.1} parent=11 // pred_check
          %p188 = pneg %p63
        $region14: #{tpu_custom_call.1} parent=11 // pred_check_branch
          %190 = sbr.rel (%p188) target = $region16
        $region15: #{tpu_custom_call.1} parent=11 // pred_region
          _
        $region16: #{tpu_custom_call.1} parent=11 // pred_fallthru
          _
        // Predicated region
        $region17: #{tpu_custom_call.1} parent=11 // pred_check
          %p191 = pneg %p84
        $region18: #{tpu_custom_call.1} parent=11 // pred_check_branch
          %193 = sbr.rel (%p191) target = $region20
        $region19: #{tpu_custom_call.1} parent=11 // pred_region
          _
        $region20: #{tpu_custom_call.1} parent=11 // pred_fallthru
          _
        // Predicated region
        $region21: #{tpu_custom_call.1} parent=11 // pred_check
          %p194 = pneg %p105
        $region22: #{tpu_custom_call.1} parent=11 // pred_check_branch
          %196 = sbr.rel (%p194) target = $region24
        $region23: #{tpu_custom_call.1} parent=11 // pred_region
          %s198 = ssub.s32 3072, 3072
          %199 = vsyncadd [#allocation3], %s198
          %s200 = sshll.u32 [#allocation2], 4
          %s201 = int_to_ptr.vmem [resolvable:$true] %s200
          %206 = dma.hbm_to_vmem [thread:$0]  %s3, 3072, %s201, [#allocation3], 64, 64, 4
        $region24: #{tpu_custom_call.1} parent=11 // pred_fallthru
          _
        // Predicated region
        $region25: #{tpu_custom_call.1} parent=11 // pred_check
          %p207 = pneg %p126
        $region26: #{tpu_custom_call.1} parent=11 // pred_check_branch
          %209 = sbr.rel (%p207) target = $region28
        $region27: #{tpu_custom_call.1} parent=11 // pred_region
          _
        $region28: #{tpu_custom_call.1} parent=11 // pred_fallthru
          _
        // Predicated region
        $region29: #{tpu_custom_call.1} parent=11 // pred_check
          %p210 = pneg %p147
        $region30: #{tpu_custom_call.1} parent=11 // pred_check_branch
          %212 = sbr.rel (%p210) target = $region32
        $region31: #{tpu_custom_call.1} parent=11 // pred_region
          _
        $region32: #{tpu_custom_call.1} parent=11 // pred_fallthru
          _
      $region12: #{tpu_custom_call.1} parent=5 // pred_fallthru
        _
      %p213 = scmp.lt.s32.totalorder %s16, 2
      // Predicated region
      $region33: #{tpu_custom_call.1} parent=5 // pred_check
        %p214 = pneg %p213
      $region34: #{tpu_custom_call.1} parent=5 // pred_check_branch
        %216 = sbr.rel (%p214) target = $region36
      $region35: #{tpu_custom_call.1} parent=5 // pred_region
        // Predicated region
        $region37: #{tpu_custom_call.1} parent=35 // pred_check
          %p217 = pneg %p36
        $region38: #{tpu_custom_call.1} parent=35 // pred_check_branch
          %219 = sbr.rel (%p217) target = $region40
        $region39: #{tpu_custom_call.1} parent=35 // pred_region
          %p220 = scmp.lt.s32.totalorder %s16, 1
          %s221 = scalar_select %p220, %s16, 1
          %s222 = smul.addr %s221, 16
          %s223 = smul.addr %s222, 4
          %s224 = scalar_lea.vmem %s0, %s223
        $region40: #{tpu_custom_call.1} parent=35 // pred_fallthru
          _
      $region36: #{tpu_custom_call.1} parent=5 // pred_fallthru
        _
      %p225 = scmp.le.s32.totalorder 1, %s16
      %p226 = scmp.lt.s32.totalorder %s16, 3
      %p227 = pnand %p225, %p226
      %p228 = pneg %p227
      // Predicated region
      $region41: #{tpu_custom_call.1} parent=5 // pred_check
        _
      $region42: #{tpu_custom_call.1} parent=5 // pred_check_branch
        %230 = sbr.rel (%p227) target = $region44
      $region43: #{tpu_custom_call.1} parent=5 // pred_region
        %s231 = ssub.s32 %s16, 1
        // Predicated region
        $region45: #{tpu_custom_call.1} parent=43 // pred_check
          %p232 = pneg %p105
        $region46: #{tpu_custom_call.1} parent=43 // pred_check_branch
          %234 = sbr.rel (%p232) target = $region48
        $region47: #{tpu_custom_call.1} parent=43 // pred_region
          %235 = dma.done [#allocation3], 3072
        $region48: #{tpu_custom_call.1} parent=43 // pred_fallthru
          _
        %p236 = scmp.lt.s32.totalorder %s21, 1
        %s237 = scalar_select %p236, %s21, 1
        %s238 = smul.addr %s237, 16
        %s239 = smul.addr %s238, 4
        %s240 = scalar_lea.vmem %s0, %s239
        %p241 = pneg %p42
        %p242 = pneg %p39
        %p243 = pneg %p63
        %p244 = pneg %p60
        %p245 = pneg %p84
        %p246 = pneg %p81
        %p247 = pneg %p105
        %p248 = pneg %p102
        %p249 = pneg %p126
        %p250 = pneg %p123
        %p251 = pneg %p147
        %p252 = pneg %p144
        %p253 = pneg %p173
        %p254 = pneg %p170
        %s255 = sand.u32 %s160, 1
        %s256 = scalar_lea.sflag [#allocation4], %s255
        %s257 = sand.u32 %s160, 1
        %s258 = smul.addr %s257, 128
        %s259 = scalar_lea.vmem [#allocation5], %s258
        %p260 = scmp.lt.s32.totalorder %s21, 1
        %s261 = scalar_select %p260, %s21, 1
        %s262 = smul.addr %s261, 16
        %s263 = smul.addr %s262, 4
        %s264 = scalar_lea.vmem %s0, %s263
        %v266 = vld [vmem:[%s264] sm:$0xf]
        %v267 = vld [vmem:[%s264 + $0x4] sm:$0xf]
        %v268 = vld [vmem:[%s264 + $0x8] sm:$0xf]
        %v269 = vld [vmem:[%s264 + $0xc] sm:$0xf]
        %v270 = vld [vmem:[%s264 + $0x10] sm:$0xf]
        %v271 = vld [vmem:[%s264 + $0x14] sm:$0xf]
        %v272 = vld [vmem:[%s264 + $0x18] sm:$0xf]
        %v273 = vld [vmem:[%s264 + $0x1c] sm:$0xf]
        %v274 = vld [vmem:[%s264 + $0x20] sm:$0xf]
        %v275 = vld [vmem:[%s264 + $0x24] sm:$0xf]
        %v276 = vld [vmem:[%s264 + $0x28] sm:$0xf]
        %v277 = vld [vmem:[%s264 + $0x2c] sm:$0xf]
        %v278 = vld [vmem:[%s264 + $0x30] sm:$0xf]
        %v279 = vld [vmem:[%s264 + $0x34] sm:$0xf]
        %v280 = vld [vmem:[%s264 + $0x38] sm:$0xf]
        %v281 = vld [vmem:[%s264 + $0x3c] sm:$0xf]
        %v282 = vld [vmem:[%s2] sm:$0x3f]
        %v299 = vunpack.c.l.b16 %v266
        %v300 = vunpack.c.l.b16 %v267
        %v301 = vunpack.c.l.b16 %v268
        %v302 = vunpack.c.l.b16 %v269
        %v303 = vunpack.c.l.b16 %v270
        %v304 = vunpack.c.l.b16 %v271
        %v305 = vunpack.c.l.b16 %v272
        %v306 = vunpack.c.l.b16 %v273
        %v307 = vunpack.c.l.b16 %v274
        %v308 = vunpack.c.l.b16 %v275
        %v309 = vunpack.c.l.b16 %v276
        %v310 = vunpack.c.l.b16 %v277
        %v311 = vunpack.c.l.b16 %v278
        %v312 = vunpack.c.l.b16 %v279
        %v313 = vunpack.c.l.b16 %v280
        %v314 = vunpack.c.l.b16 %v281
        %v315 = vpack.c.b16 %v300, %v299
        %v316 = vpack.c.b16 %v302, %v301
        %v317 = vpack.c.b16 %v304, %v303
        %v318 = vpack.c.b16 %v306, %v305
        %v319 = vpack.c.b16 %v308, %v307
        %v320 = vpack.c.b16 %v310, %v309
        %v321 = vpack.c.b16 %v312, %v311
        %v322 = vpack.c.b16 %v314, %v313
        %v324 = vcombine.high %v282, %v282
        %v326 = vunpack.c.l.s4 1983009808
        %v327 = vunpack.c.0.s8 %v326
        %v328 = vlaneseq
        %v329 = vshrl.u32 %v328, 7
        %v330 = vsub.s32 %v327, %v329
        %v331 = vrot.slane %v282, %v330
        %v333 = vunpack.c.l.s4 1983009808
        %v334 = vunpack.c.0.s8 %v333
        %v335 = vlaneseq
        %v336 = vshrl.u32 %v335, 7
        %v337 = vsub.s32 %v334, %v336
        %v338 = vrot.slane %v324, %v337
        %v339 = vcombine.high %v331, %v331
        %vm340 = vcmask 31744
        %v342 = vsel %vm340, %v315, 0
        %v345 = vsel %vm340, %v316, 0
        %v348 = vsel %vm340, %v317, 0
        %v351 = vsel %vm340, %v318, 0
        %v354 = vsel %vm340, %v319, 0
        %v357 = vsel %vm340, %v320, 0
        %v360 = vsel %vm340, %v321, 0
        %v363 = vsel %vm340, %v322, 0
        %vm365 = vcmask 1041408
        %v367 = vsel %vm365, %v331, 0
        %v370 = vsel %vm365, %v339, 0
        %v373 = vsel %vm365, %v338, 0
        %375 = vmatprep.subr.bf16.mxu0 %v370
        %376 = vmatpush1.bf16.msra.mxu0 %v367
        %377 = vmatprep.subr.bf16.mxu0 0
        %378 = vmatpush1.bf16.msra.mxu0 0
        %379 = vmatprep.subr.bf16.mxu0 0
        %380 = vmatpush1.bf16.msra.mxu0 0
        %381 = vmatprep.subr.bf16.mxu0 0
        %382 = vmatpush1.bf16.msra.mxu0 0
        %383 = vmatprep.subr.bf16.mxu0 0
        %384 = vmatpush1.bf16.msra.mxu0 0
        %385 = vmatprep.subr.bf16.mxu0 0
        %386 = vmatpush1.bf16.msra.mxu0 0
        %387 = vmatprep.subr.bf16.mxu0 0
        %388 = vmatpush1.bf16.msra.mxu0 0
        %389 = vmatprep.subr.bf16.mxu0 0
        %390 = vmatpush1.bf16.msra.mxu0 0
        %391 = vmatprep.subr.bf16.mxu0 0
        %392 = vmatpush1.bf16.msra.mxu0 0
        %393 = vmatprep.subr.bf16.mxu0 0
        %394 = vmatpush1.bf16.msra.mxu0 0
        %395 = vmatprep.subr.bf16.mxu0 0
        %396 = vmatpush1.bf16.msra.mxu0 0
        %397 = vmatprep.subr.bf16.mxu0 0
        %398 = vmatpush1.bf16.msra.mxu0 0
        %399 = vmatprep.subr.bf16.mxu0 0
        %400 = vmatpush1.bf16.msra.mxu0 0
        %401 = vmatprep.subr.bf16.mxu0 0
        %402 = vmatpush1.bf16.msra.mxu0 0
        %403 = vmatprep.subr.bf16.mxu0 0
        %404 = vmatpush1.bf16.msra.mxu0 0
        %405 = vmatprep.subr.bf16.mxu0 0
        %406 = vmatpush1.bf16.msra.mxu0 0
        %407 = vmatprep.mubr.bf16.mxu0 0
        %408 = vmatmul.mubr.bf16.gmra.mrb[0].mxu0 %v342
        %v409 = vpop.f32.mrb[0].mxu0
        %v410 = vadd.f32 0.0, %v409
        %v411 = vpop.f32.mrb[0].mxu0
        %v412 = vadd.f32 0.0, %v411
        %v413 = vpop.f32.mrb[0].mxu0
        %v414 = vadd.f32 0.0, %v413
        %v415 = vpop.f32.mrb[0].mxu0
        %v416 = vadd.f32 0.0, %v415
        %417 = vmatprep.mubr.bf16.mxu0 0
        %418 = vmatmul.mubr.bf16.gmra.mrb[0].mxu0 %v345
        %v419 = vpop.f32.mrb[0].mxu0
        %v420 = vadd.f32 0.0, %v419
        %v421 = vpop.f32.mrb[0].mxu0
        %v422 = vadd.f32 0.0, %v421
        %v423 = vpop.f32.mrb[0].mxu0
        %v424 = vadd.f32 0.0, %v423
        %v425 = vpop.f32.mrb[0].mxu0
        %v426 = vadd.f32 0.0, %v425
        %427 = vmatprep.mubr.bf16.mxu0 0
        %428 = vmatmul.mubr.bf16.gmra.mrb[0].mxu0 %v348
        %v429 = vpop.f32.mrb[0].mxu0
        %v430 = vadd.f32 0.0, %v429
        %v431 = vpop.f32.mrb[0].mxu0
        %v432 = vadd.f32 0.0, %v431
        %v433 = vpop.f32.mrb[0].mxu0
        %v434 = vadd.f32 0.0, %v433
        %v435 = vpop.f32.mrb[0].mxu0
        %v436 = vadd.f32 0.0, %v435
        %437 = vmatprep.mubr.bf16.mxu0 0
        %438 = vmatmul.mubr.bf16.gmra.mrb[0].mxu0 %v351
        %v439 = vpop.f32.mrb[0].mxu0
        %v440 = vadd.f32 0.0, %v439
        %v441 = vpop.f32.mrb[0].mxu0
        %v442 = vadd.f32 0.0, %v441
        %v443 = vpop.f32.mrb[0].mxu0
        %v444 = vadd.f32 0.0, %v443
        %v445 = vpop.f32.mrb[0].mxu0
        %v446 = vadd.f32 0.0, %v445
        %447 = vmatprep.mubr.bf16.mxu0 0
        %448 = vmatmul.mubr.bf16.gmra.mrb[0].mxu0 %v354
        %v449 = vpop.f32.mrb[0].mxu0
        %v450 = vadd.f32 0.0, %v449
        %v451 = vpop.f32.mrb[0].mxu0
        %v452 = vadd.f32 0.0, %v451
        %v453 = vpop.f32.mrb[0].mxu0
        %v454 = vadd.f32 0.0, %v453
        %v455 = vpop.f32.mrb[0].mxu0
        %v456 = vadd.f32 0.0, %v455
        %457 = vmatprep.mubr.bf16.mxu0 0
        %458 = vmatmul.mubr.bf16.gmra.mrb[0].mxu0 %v357
        %v459 = vpop.f32.mrb[0].mxu0
        %v460 = vadd.f32 0.0, %v459
        %v461 = vpop.f32.mrb[0].mxu0
        %v462 = vadd.f32 0.0, %v461
        %v463 = vpop.f32.mrb[0].mxu0
        %v464 = vadd.f32 0.0, %v463
        %v465 = vpop.f32.mrb[0].mxu0
        %v466 = vadd.f32 0.0, %v465
        %467 = vmatprep.mubr.bf16.mxu0 0
        %468 = vmatmul.mubr.bf16.gmra.mrb[0].mxu0 %v360
        %v469 = vpop.f32.mrb[0].mxu0
        %v470 = vadd.f32 0.0, %v469
        %v471 = vpop.f32.mrb[0].mxu0
        %v472 = vadd.f32 0.0, %v471
        %v473 = vpop.f32.mrb[0].mxu0
        %v474 = vadd.f32 0.0, %v473
        %v475 = vpop.f32.mrb[0].mxu0
        %v476 = vadd.f32 0.0, %v475
        %477 = vmatprep.mubr.bf16.mxu0 0
        %478 = vmatmul.mubr.bf16.gmra.mrb[0].mxu0 %v363
        %v479 = vpop.f32.mrb[0].mxu0
        %v480 = vadd.f32 0.0, %v479
        %v481 = vpop.f32.mrb[0].mxu0
        %v482 = vadd.f32 0.0, %v481
        %v483 = vpop.f32.mrb[0].mxu0
        %v484 = vadd.f32 0.0, %v483
        %v485 = vpop.f32.mrb[0].mxu0
        %v486 = vadd.f32 0.0, %v485
        %487 = vdwg.mxu0
        %488 = vmatprep.subr.bf16.mxu0 0
        %489 = vmatpush1.bf16.msra.mxu0 %v373
        %490 = vmatprep.subr.bf16.mxu0 0
        %491 = vmatpush1.bf16.msra.mxu0 0
        %492 = vmatprep.subr.bf16.mxu0 0
        %493 = vmatpush1.bf16.msra.mxu0 0
        %494 = vmatprep.subr.bf16.mxu0 0
        %495 = vmatpush1.bf16.msra.mxu0 0
        %496 = vmatprep.subr.bf16.mxu0 0
        %497 = vmatpush1.bf16.msra.mxu0 0
        %498 = vmatprep.subr.bf16.mxu0 0
        %499 = vmatpush1.bf16.msra.mxu0 0
        %500 = vmatprep.subr.bf16.mxu0 0
        %501 = vmatpush1.bf16.msra.mxu0 0
        %502 = vmatprep.subr.bf16.mxu0 0
        %503 = vmatpush1.bf16.msra.mxu0 0
        %504 = vmatprep.subr.bf16.mxu0 0
        %505 = vmatpush1.bf16.msra.mxu0 0
        %506 = vmatprep.subr.bf16.mxu0 0
        %507 = vmatpush1.bf16.msra.mxu0 0
        %508 = vmatprep.subr.bf16.mxu0 0
        %509 = vmatpush1.bf16.msra.mxu0 0
        %510 = vmatprep.subr.bf16.mxu0 0
        %511 = vmatpush1.bf16.msra.mxu0 0
        %512 = vmatprep.subr.bf16.mxu0 0
        %513 = vmatpush1.bf16.msra.mxu0 0
        %514 = vmatprep.subr.bf16.mxu0 0
        %515 = vmatpush1.bf16.msra.mxu0 0
        %516 = vmatprep.subr.bf16.mxu0 0
        %517 = vmatpush1.bf16.msra.mxu0 0
        %518 = vmatprep.subr.bf16.mxu0 0
        %519 = vmatpush1.bf16.msra.mxu0 0
        %520 = vmatprep.mubr.bf16.mxu0 0
        %521 = vmatmul.mubr.bf16.gmra.mrb[0].mxu0 %v342
        %v522 = vpop.f32.mrb[0].mxu0
        %v523 = vadd.f32 0.0, %v522
        %v524 = vpop.f32.mrb[0].mxu0
        %v525 = vpop.f32.mrb[0].mxu0
        %v526 = vadd.f32 0.0, %v525
        %v527 = vpop.f32.mrb[0].mxu0
        %528 = vmatprep.mubr.bf16.mxu0 0
        %529 = vmatmul.mubr.bf16.gmra.mrb[0].mxu0 %v345
        %v530 = vpop.f32.mrb[0].mxu0
        %v531 = vadd.f32 0.0, %v530
        %v532 = vpop.f32.mrb[0].mxu0
        %v533 = vpop.f32.mrb[0].mxu0
        %v534 = vadd.f32 0.0, %v533
        %v535 = vpop.f32.mrb[0].mxu0
        %536 = vmatprep.mubr.bf16.mxu0 0
        %537 = vmatmul.mubr.bf16.gmra.mrb[0].mxu0 %v348
        %v538 = vpop.f32.mrb[0].mxu0
        %v539 = vadd.f32 0.0, %v538
        %v540 = vpop.f32.mrb[0].mxu0
        %v541 = vpop.f32.mrb[0].mxu0
        %v542 = vadd.f32 0.0, %v541
        %v543 = vpop.f32.mrb[0].mxu0
        %544 = vmatprep.mubr.bf16.mxu0 0
        %545 = vmatmul.mubr.bf16.gmra.mrb[0].mxu0 %v351
        %v546 = vpop.f32.mrb[0].mxu0
        %v547 = vadd.f32 0.0, %v546
        %v548 = vpop.f32.mrb[0].mxu0
        %v549 = vpop.f32.mrb[0].mxu0
        %v550 = vadd.f32 0.0, %v549
        %v551 = vpop.f32.mrb[0].mxu0
        %552 = vmatprep.mubr.bf16.mxu0 0
        %553 = vmatmul.mubr.bf16.gmra.mrb[0].mxu0 %v354
        %v554 = vpop.f32.mrb[0].mxu0
        %v555 = vadd.f32 0.0, %v554
        %v556 = vpop.f32.mrb[0].mxu0
        %v557 = vpop.f32.mrb[0].mxu0
        %v558 = vadd.f32 0.0, %v557
        %v559 = vpop.f32.mrb[0].mxu0
        %560 = vmatprep.mubr.bf16.mxu0 0
        %561 = vmatmul.mubr.bf16.gmra.mrb[0].mxu0 %v357
        %v562 = vpop.f32.mrb[0].mxu0
        %v563 = vadd.f32 0.0, %v562
        %v564 = vpop.f32.mrb[0].mxu0
        %v565 = vpop.f32.mrb[0].mxu0
        %v566 = vadd.f32 0.0, %v565
        %v567 = vpop.f32.mrb[0].mxu0
        %568 = vmatprep.mubr.bf16.mxu0 0
        %569 = vmatmul.mubr.bf16.gmra.mrb[0].mxu0 %v360
        %v570 = vpop.f32.mrb[0].mxu0
        %v571 = vadd.f32 0.0, %v570
        %v572 = vpop.f32.mrb[0].mxu0
        %v573 = vpop.f32.mrb[0].mxu0
        %v574 = vadd.f32 0.0, %v573
        %v575 = vpop.f32.mrb[0].mxu0
        %576 = vmatprep.mubr.bf16.mxu0 0
        %577 = vmatmul.mubr.bf16.gmra.mrb[0].mxu0 %v363
        %v578 = vpop.f32.mrb[0].mxu0
        %v579 = vadd.f32 0.0, %v578
        %v580 = vpop.f32.mrb[0].mxu0
        %v581 = vpop.f32.mrb[0].mxu0
        %v582 = vadd.f32 0.0, %v581
        %v583 = vpop.f32.mrb[0].mxu0
        %584 = vdwg.mxu0
        %v601 = vcombine.low %v410, %v414
        %v602 = vcombine.high %v410, %v414
        %v603 = vcombine.low %v420, %v424
        %v604 = vcombine.high %v420, %v424
        %v605 = vcombine.low %v430, %v434
        %v606 = vcombine.high %v430, %v434
        %v607 = vcombine.low %v440, %v444
        %v608 = vcombine.high %v440, %v444
        %v610 = vunpack.c.l.s4 1966171168
        %v611 = vunpack.c.0.s8 %v610
        %v612 = vlaneseq
        %v613 = vshrl.u32 %v612, 7
        %v614 = vsub.s32 %v611, %v613
        %v615 = vrot.slane %v601, %v614
        %v617 = vunpack.c.l.s4 1966171168
        %v618 = vunpack.c.0.s8 %v617
        %v619 = vlaneseq
        %v620 = vshrl.u32 %v619, 7
        %v621 = vsub.s32 %v618, %v620
        %v622 = vrot.slane %v602, %v621
        %v624 = vunpack.c.l.s4 1966171168
        %v625 = vunpack.c.0.s8 %v624
        %v626 = vlaneseq
        %v627 = vshrl.u32 %v626, 7
        %v628 = vsub.s32 %v625, %v627
        %v629 = vrot.slane %v603, %v628
        %v631 = vunpack.c.l.s4 1966171168
        %v632 = vunpack.c.0.s8 %v631
        %v633 = vlaneseq
        %v634 = vshrl.u32 %v633, 7
        %v635 = vsub.s32 %v632, %v634
        %v636 = vrot.slane %v604, %v635
        %v638 = vunpack.c.l.s4 1966171168
        %v639 = vunpack.c.0.s8 %v638
        %v640 = vlaneseq
        %v641 = vshrl.u32 %v640, 7
        %v642 = vsub.s32 %v639, %v641
        %v643 = vrot.slane %v605, %v642
        %v645 = vunpack.c.l.s4 1966171168
        %v646 = vunpack.c.0.s8 %v645
        %v647 = vlaneseq
        %v648 = vshrl.u32 %v647, 7
        %v649 = vsub.s32 %v646, %v648
        %v650 = vrot.slane %v606, %v649
        %v652 = vunpack.c.l.s4 1966171168
        %v653 = vunpack.c.0.s8 %v652
        %v654 = vlaneseq
        %v655 = vshrl.u32 %v654, 7
        %v656 = vsub.s32 %v653, %v655
        %v657 = vrot.slane %v607, %v656
        %v659 = vunpack.c.l.s4 1966171168
        %v660 = vunpack.c.0.s8 %v659
        %v661 = vlaneseq
        %v662 = vshrl.u32 %v661, 7
        %v663 = vsub.s32 %v660, %v662
        %v664 = vrot.slane %v608, %v663
        %v665 = vcombine.low %v615, %v629
        %v666 = vcombine.high %v615, %v629
        %v667 = vcombine.low %v622, %v636
        %v668 = vcombine.high %v622, %v636
        %v669 = vcombine.low %v643, %v657
        %v670 = vcombine.high %v643, %v657
        %v671 = vcombine.low %v650, %v664
        %v672 = vcombine.high %v650, %v664
        %v674 = vunpack.c.l.s4 1966171168
        %v675 = vunpack.c.0.s8 %v674
        %v676 = vlaneseq
        %v677 = vshrl.u32 %v676, 7
        %v678 = vsub.s32 %v675, %v677
        %v679 = vrot.slane %v665, %v678
        %v681 = vunpack.c.l.s4 1966171168
        %v682 = vunpack.c.0.s8 %v681
        %v683 = vlaneseq
        %v684 = vshrl.u32 %v683, 7
        %v685 = vsub.s32 %v682, %v684
        %v686 = vrot.slane %v667, %v685
        %v688 = vunpack.c.l.s4 1966171168
        %v689 = vunpack.c.0.s8 %v688
        %v690 = vlaneseq
        %v691 = vshrl.u32 %v690, 7
        %v692 = vsub.s32 %v689, %v691
        %v693 = vrot.slane %v666, %v692
        %v695 = vunpack.c.l.s4 1966171168
        %v696 = vunpack.c.0.s8 %v695
        %v697 = vlaneseq
        %v698 = vshrl.u32 %v697, 7
        %v699 = vsub.s32 %v696, %v698
        %v700 = vrot.slane %v668, %v699
        %v702 = vunpack.c.l.s4 1966171168
        %v703 = vunpack.c.0.s8 %v702
        %v704 = vlaneseq
        %v705 = vshrl.u32 %v704, 7
        %v706 = vsub.s32 %v703, %v705
        %v707 = vrot.slane %v669, %v706
        %v709 = vunpack.c.l.s4 1966171168
        %v710 = vunpack.c.0.s8 %v709
        %v711 = vlaneseq
        %v712 = vshrl.u32 %v711, 7
        %v713 = vsub.s32 %v710, %v712
        %v714 = vrot.slane %v671, %v713
        %v716 = vunpack.c.l.s4 1966171168
        %v717 = vunpack.c.0.s8 %v716
        %v718 = vlaneseq
        %v719 = vshrl.u32 %v718, 7
        %v720 = vsub.s32 %v717, %v719
        %v721 = vrot.slane %v670, %v720
        %v723 = vunpack.c.l.s4 1966171168
        %v724 = vunpack.c.0.s8 %v723
        %v725 = vlaneseq
        %v726 = vshrl.u32 %v725, 7
        %v727 = vsub.s32 %v724, %v726
        %v728 = vrot.slane %v672, %v727
        %v729 = vcombine.low %v679, %v707
        %v730 = vcombine.high %v679, %v707
        %v731 = vcombine.low %v686, %v714
        %v732 = vcombine.high %v686, %v714
        %v733 = vcombine.low %v693, %v721
        %v734 = vcombine.high %v693, %v721
        %v735 = vcombine.low %v700, %v728
        %v736 = vcombine.high %v700, %v728
        %v737 = vcombine.low %v450, %v454
        %v738 = vcombine.high %v450, %v454
        %v739 = vcombine.low %v460, %v464
        %v740 = vcombine.high %v460, %v464
        %v741 = vcombine.low %v470, %v474
        %v742 = vcombine.high %v470, %v474
        %v743 = vcombine.low %v480, %v484
        %v744 = vcombine.high %v480, %v484
        %v746 = vunpack.c.l.s4 1966171168
        %v747 = vunpack.c.0.s8 %v746
        %v748 = vlaneseq
        %v749 = vshrl.u32 %v748, 7
        %v750 = vsub.s32 %v747, %v749
        %v751 = vrot.slane %v737, %v750
        %v753 = vunpack.c.l.s4 1966171168
        %v754 = vunpack.c.0.s8 %v753
        %v755 = vlaneseq
        %v756 = vshrl.u32 %v755, 7
        %v757 = vsub.s32 %v754, %v756
        %v758 = vrot.slane %v738, %v757
        %v760 = vunpack.c.l.s4 1966171168
        %v761 = vunpack.c.0.s8 %v760
        %v762 = vlaneseq
        %v763 = vshrl.u32 %v762, 7
        %v764 = vsub.s32 %v761, %v763
        %v765 = vrot.slane %v739, %v764
        %v767 = vunpack.c.l.s4 1966171168
        %v768 = vunpack.c.0.s8 %v767
        %v769 = vlaneseq
        %v770 = vshrl.u32 %v769, 7
        %v771 = vsub.s32 %v768, %v770
        %v772 = vrot.slane %v740, %v771
        %v774 = vunpack.c.l.s4 1966171168
        %v775 = vunpack.c.0.s8 %v774
        %v776 = vlaneseq
        %v777 = vshrl.u32 %v776, 7
        %v778 = vsub.s32 %v775, %v777
        %v779 = vrot.slane %v741, %v778
        %v781 = vunpack.c.l.s4 1966171168
        %v782 = vunpack.c.0.s8 %v781
        %v783 = vlaneseq
        %v784 = vshrl.u32 %v783, 7
        %v785 = vsub.s32 %v782, %v784
        %v786 = vrot.slane %v742, %v785
        %v788 = vunpack.c.l.s4 1966171168
        %v789 = vunpack.c.0.s8 %v788
        %v790 = vlaneseq
        %v791 = vshrl.u32 %v790, 7
        %v792 = vsub.s32 %v789, %v791
        %v793 = vrot.slane %v743, %v792
        %v795 = vunpack.c.l.s4 1966171168
        %v796 = vunpack.c.0.s8 %v795
        %v797 = vlaneseq
        %v798 = vshrl.u32 %v797, 7
        %v799 = vsub.s32 %v796, %v798
        %v800 = vrot.slane %v744, %v799
        %v801 = vcombine.low %v751, %v765
        %v802 = vcombine.high %v751, %v765
        %v803 = vcombine.low %v758, %v772
        %v804 = vcombine.high %v758, %v772
        %v805 = vcombine.low %v779, %v793
        %v806 = vcombine.high %v779, %v793
        %v807 = vcombine.low %v786, %v800
        %v808 = vcombine.high %v786, %v800
        %v810 = vunpack.c.l.s4 1966171168
        %v811 = vunpack.c.0.s8 %v810
        %v812 = vlaneseq
        %v813 = vshrl.u32 %v812, 7
        %v814 = vsub.s32 %v811, %v813
        %v815 = vrot.slane %v801, %v814
        %v817 = vunpack.c.l.s4 1966171168
        %v818 = vunpack.c.0.s8 %v817
        %v819 = vlaneseq
        %v820 = vshrl.u32 %v819, 7
        %v821 = vsub.s32 %v818, %v820
        %v822 = vrot.slane %v803, %v821
        %v824 = vunpack.c.l.s4 1966171168
        %v825 = vunpack.c.0.s8 %v824
        %v826 = vlaneseq
        %v827 = vshrl.u32 %v826, 7
        %v828 = vsub.s32 %v825, %v827
        %v829 = vrot.slane %v802, %v828
        %v831 = vunpack.c.l.s4 1966171168
        %v832 = vunpack.c.0.s8 %v831
        %v833 = vlaneseq
        %v834 = vshrl.u32 %v833, 7
        %v835 = vsub.s32 %v832, %v834
        %v836 = vrot.slane %v804, %v835
        %v838 = vunpack.c.l.s4 1966171168
        %v839 = vunpack.c.0.s8 %v838
        %v840 = vlaneseq
        %v841 = vshrl.u32 %v840, 7
        %v842 = vsub.s32 %v839, %v841
        %v843 = vrot.slane %v805, %v842
        %v845 = vunpack.c.l.s4 1966171168
        %v846 = vunpack.c.0.s8 %v845
        %v847 = vlaneseq
        %v848 = vshrl.u32 %v847, 7
        %v849 = vsub.s32 %v846, %v848
        %v850 = vrot.slane %v807, %v849
        %v852 = vunpack.c.l.s4 1966171168
        %v853 = vunpack.c.0.s8 %v852
        %v854 = vlaneseq
        %v855 = vshrl.u32 %v854, 7
        %v856 = vsub.s32 %v853, %v855
        %v857 = vrot.slane %v806, %v856
        %v859 = vunpack.c.l.s4 1966171168
        %v860 = vunpack.c.0.s8 %v859
        %v861 = vlaneseq
        %v862 = vshrl.u32 %v861, 7
        %v863 = vsub.s32 %v860, %v862
        %v864 = vrot.slane %v808, %v863
        %v865 = vcombine.low %v815, %v843
        %v866 = vcombine.high %v815, %v843
        %v867 = vcombine.low %v822, %v850
        %v868 = vcombine.high %v822, %v850
        %v869 = vcombine.low %v829, %v857
        %v870 = vcombine.high %v829, %v857
        %v871 = vcombine.low %v836, %v864
        %v872 = vcombine.high %v836, %v864
        %v905 = vcombine.low %v412, %v416
        %v906 = vcombine.high %v412, %v416
        %v907 = vcombine.low %v422, %v426
        %v908 = vcombine.high %v422, %v426
        %v909 = vcombine.low %v432, %v436
        %v910 = vcombine.high %v432, %v436
        %v911 = vcombine.low %v442, %v446
        %v912 = vcombine.high %v442, %v446
        %v914 = vunpack.c.l.s4 1966171168
        %v915 = vunpack.c.0.s8 %v914
        %v916 = vlaneseq
        %v917 = vshrl.u32 %v916, 7
        %v918 = vsub.s32 %v915, %v917
        %v919 = vrot.slane %v905, %v918
        %v921 = vunpack.c.l.s4 1966171168
        %v922 = vunpack.c.0.s8 %v921
        %v923 = vlaneseq
        %v924 = vshrl.u32 %v923, 7
        %v925 = vsub.s32 %v922, %v924
        %v926 = vrot.slane %v906, %v925
        %v928 = vunpack.c.l.s4 1966171168
        %v929 = vunpack.c.0.s8 %v928
        %v930 = vlaneseq
        %v931 = vshrl.u32 %v930, 7
        %v932 = vsub.s32 %v929, %v931
        %v933 = vrot.slane %v907, %v932
        %v935 = vunpack.c.l.s4 1966171168
        %v936 = vunpack.c.0.s8 %v935
        %v937 = vlaneseq
        %v938 = vshrl.u32 %v937, 7
        %v939 = vsub.s32 %v936, %v938
        %v940 = vrot.slane %v908, %v939
        %v942 = vunpack.c.l.s4 1966171168
        %v943 = vunpack.c.0.s8 %v942
        %v944 = vlaneseq
        %v945 = vshrl.u32 %v944, 7
        %v946 = vsub.s32 %v943, %v945
        %v947 = vrot.slane %v909, %v946
        %v949 = vunpack.c.l.s4 1966171168
        %v950 = vunpack.c.0.s8 %v949
        %v951 = vlaneseq
        %v952 = vshrl.u32 %v951, 7
        %v953 = vsub.s32 %v950, %v952
        %v954 = vrot.slane %v910, %v953
        %v956 = vunpack.c.l.s4 1966171168
        %v957 = vunpack.c.0.s8 %v956
        %v958 = vlaneseq
        %v959 = vshrl.u32 %v958, 7
        %v960 = vsub.s32 %v957, %v959
        %v961 = vrot.slane %v911, %v960
        %v963 = vunpack.c.l.s4 1966171168
        %v964 = vunpack.c.0.s8 %v963
        %v965 = vlaneseq
        %v966 = vshrl.u32 %v965, 7
        %v967 = vsub.s32 %v964, %v966
        %v968 = vrot.slane %v912, %v967
        %v969 = vcombine.low %v919, %v933
        %v970 = vcombine.high %v919, %v933
        %v971 = vcombine.low %v926, %v940
        %v972 = vcombine.high %v926, %v940
        %v973 = vcombine.low %v947, %v961
        %v974 = vcombine.high %v947, %v961
        %v975 = vcombine.low %v954, %v968
        %v976 = vcombine.high %v954, %v968
        %v978 = vunpack.c.l.s4 1966171168
        %v979 = vunpack.c.0.s8 %v978
        %v980 = vlaneseq
        %v981 = vshrl.u32 %v980, 7
        %v982 = vsub.s32 %v979, %v981
        %v983 = vrot.slane %v969, %v982
        %v985 = vunpack.c.l.s4 1966171168
        %v986 = vunpack.c.0.s8 %v985
        %v987 = vlaneseq
        %v988 = vshrl.u32 %v987, 7
        %v989 = vsub.s32 %v986, %v988
        %v990 = vrot.slane %v971, %v989
        %v992 = vunpack.c.l.s4 1966171168
        %v993 = vunpack.c.0.s8 %v992
        %v994 = vlaneseq
        %v995 = vshrl.u32 %v994, 7
        %v996 = vsub.s32 %v993, %v995
        %v997 = vrot.slane %v970, %v996
        %v999 = vunpack.c.l.s4 1966171168
        %v1000 = vunpack.c.0.s8 %v999
        %v1001 = vlaneseq
        %v1002 = vshrl.u32 %v1001, 7
        %v1003 = vsub.s32 %v1000, %v1002
        %v1004 = vrot.slane %v972, %v1003
        %v1006 = vunpack.c.l.s4 1966171168
        %v1007 = vunpack.c.0.s8 %v1006
        %v1008 = vlaneseq
        %v1009 = vshrl.u32 %v1008, 7
        %v1010 = vsub.s32 %v1007, %v1009
        %v1011 = vrot.slane %v973, %v1010
        %v1013 = vunpack.c.l.s4 1966171168
        %v1014 = vunpack.c.0.s8 %v1013
        %v1015 = vlaneseq
        %v1016 = vshrl.u32 %v1015, 7
        %v1017 = vsub.s32 %v1014, %v1016
        %v1018 = vrot.slane %v975, %v1017
        %v1020 = vunpack.c.l.s4 1966171168
        %v1021 = vunpack.c.0.s8 %v1020
        %v1022 = vlaneseq
        %v1023 = vshrl.u32 %v1022, 7
        %v1024 = vsub.s32 %v1021, %v1023
        %v1025 = vrot.slane %v974, %v1024
        %v1027 = vunpack.c.l.s4 1966171168
        %v1028 = vunpack.c.0.s8 %v1027
        %v1029 = vlaneseq
        %v1030 = vshrl.u32 %v1029, 7
        %v1031 = vsub.s32 %v1028, %v1030
        %v1032 = vrot.slane %v976, %v1031
        %v1033 = vcombine.low %v983, %v1011
        %v1034 = vcombine.high %v983, %v1011
        %v1035 = vcombine.low %v990, %v1018
        %v1036 = vcombine.high %v990, %v1018
        %v1037 = vcombine.low %v997, %v1025
        %v1038 = vcombine.high %v997, %v1025
        %v1039 = vcombine.low %v1004, %v1032
        %v1040 = vcombine.high %v1004, %v1032
        %v1041 = vcombine.low %v452, %v456
        %v1042 = vcombine.high %v452, %v456
        %v1043 = vcombine.low %v462, %v466
        %v1044 = vcombine.high %v462, %v466
        %v1045 = vcombine.low %v472, %v476
        %v1046 = vcombine.high %v472, %v476
        %v1047 = vcombine.low %v482, %v486
        %v1048 = vcombine.high %v482, %v486
        %v1050 = vunpack.c.l.s4 1966171168
        %v1051 = vunpack.c.0.s8 %v1050
        %v1052 = vlaneseq
        %v1053 = vshrl.u32 %v1052, 7
        %v1054 = vsub.s32 %v1051, %v1053
        %v1055 = vrot.slane %v1041, %v1054
        %v1057 = vunpack.c.l.s4 1966171168
        %v1058 = vunpack.c.0.s8 %v1057
        %v1059 = vlaneseq
        %v1060 = vshrl.u32 %v1059, 7
        %v1061 = vsub.s32 %v1058, %v1060
        %v1062 = vrot.slane %v1042, %v1061
        %v1064 = vunpack.c.l.s4 1966171168
        %v1065 = vunpack.c.0.s8 %v1064
        %v1066 = vlaneseq
        %v1067 = vshrl.u32 %v1066, 7
        %v1068 = vsub.s32 %v1065, %v1067
        %v1069 = vrot.slane %v1043, %v1068
        %v1071 = vunpack.c.l.s4 1966171168
        %v1072 = vunpack.c.0.s8 %v1071
        %v1073 = vlaneseq
        %v1074 = vshrl.u32 %v1073, 7
        %v1075 = vsub.s32 %v1072, %v1074
        %v1076 = vrot.slane %v1044, %v1075
        %v1078 = vunpack.c.l.s4 1966171168
        %v1079 = vunpack.c.0.s8 %v1078
        %v1080 = vlaneseq
        %v1081 = vshrl.u32 %v1080, 7
        %v1082 = vsub.s32 %v1079, %v1081
        %v1083 = vrot.slane %v1045, %v1082
        %v1085 = vunpack.c.l.s4 1966171168
        %v1086 = vunpack.c.0.s8 %v1085
        %v1087 = vlaneseq
        %v1088 = vshrl.u32 %v1087, 7
        %v1089 = vsub.s32 %v1086, %v1088
        %v1090 = vrot.slane %v1046, %v1089
        %v1092 = vunpack.c.l.s4 1966171168
        %v1093 = vunpack.c.0.s8 %v1092
        %v1094 = vlaneseq
        %v1095 = vshrl.u32 %v1094, 7
        %v1096 = vsub.s32 %v1093, %v1095
        %v1097 = vrot.slane %v1047, %v1096
        %v1099 = vunpack.c.l.s4 1966171168
        %v1100 = vunpack.c.0.s8 %v1099
        %v1101 = vlaneseq
        %v1102 = vshrl.u32 %v1101, 7
        %v1103 = vsub.s32 %v1100, %v1102
        %v1104 = vrot.slane %v1048, %v1103
        %v1105 = vcombine.low %v1055, %v1069
        %v1106 = vcombine.high %v1055, %v1069
        %v1107 = vcombine.low %v1062, %v1076
        %v1108 = vcombine.high %v1062, %v1076
        %v1109 = vcombine.low %v1083, %v1097
        %v1110 = vcombine.high %v1083, %v1097
        %v1111 = vcombine.low %v1090, %v1104
        %v1112 = vcombine.high %v1090, %v1104
        %v1114 = vunpack.c.l.s4 1966171168
        %v1115 = vunpack.c.0.s8 %v1114
        %v1116 = vlaneseq
        %v1117 = vshrl.u32 %v1116, 7
        %v1118 = vsub.s32 %v1115, %v1117
        %v1119 = vrot.slane %v1105, %v1118
        %v1121 = vunpack.c.l.s4 1966171168
        %v1122 = vunpack.c.0.s8 %v1121
        %v1123 = vlaneseq
        %v1124 = vshrl.u32 %v1123, 7
        %v1125 = vsub.s32 %v1122, %v1124
        %v1126 = vrot.slane %v1107, %v1125
        %v1128 = vunpack.c.l.s4 1966171168
        %v1129 = vunpack.c.0.s8 %v1128
        %v1130 = vlaneseq
        %v1131 = vshrl.u32 %v1130, 7
        %v1132 = vsub.s32 %v1129, %v1131
        %v1133 = vrot.slane %v1106, %v1132
        %v1135 = vunpack.c.l.s4 1966171168
        %v1136 = vunpack.c.0.s8 %v1135
        %v1137 = vlaneseq
        %v1138 = vshrl.u32 %v1137, 7
        %v1139 = vsub.s32 %v1136, %v1138
        %v1140 = vrot.slane %v1108, %v1139
        %v1142 = vunpack.c.l.s4 1966171168
        %v1143 = vunpack.c.0.s8 %v1142
        %v1144 = vlaneseq
        %v1145 = vshrl.u32 %v1144, 7
        %v1146 = vsub.s32 %v1143, %v1145
        %v1147 = vrot.slane %v1109, %v1146
        %v1149 = vunpack.c.l.s4 1966171168
        %v1150 = vunpack.c.0.s8 %v1149
        %v1151 = vlaneseq
        %v1152 = vshrl.u32 %v1151, 7
        %v1153 = vsub.s32 %v1150, %v1152
        %v1154 = vrot.slane %v1111, %v1153
        %v1156 = vunpack.c.l.s4 1966171168
        %v1157 = vunpack.c.0.s8 %v1156
        %v1158 = vlaneseq
        %v1159 = vshrl.u32 %v1158, 7
        %v1160 = vsub.s32 %v1157, %v1159
        %v1161 = vrot.slane %v1110, %v1160
        %v1163 = vunpack.c.l.s4 1966171168
        %v1164 = vunpack.c.0.s8 %v1163
        %v1165 = vlaneseq
        %v1166 = vshrl.u32 %v1165, 7
        %v1167 = vsub.s32 %v1164, %v1166
        %v1168 = vrot.slane %v1112, %v1167
        %v1169 = vcombine.low %v1119, %v1147
        %v1170 = vcombine.high %v1119, %v1147
        %v1171 = vcombine.low %v1126, %v1154
        %v1172 = vcombine.high %v1126, %v1154
        %v1173 = vcombine.low %v1133, %v1161
        %v1174 = vcombine.high %v1133, %v1161
        %v1175 = vcombine.low %v1140, %v1168
        %v1176 = vcombine.high %v1140, %v1168
        %v1193 = vld [vmem:[%s1] sm:$0xff]
        %v1194 = vld [vmem:[%s1 + $0x8] sm:$0xff]
        %vm1195 = vcmask 261120
        %v1197 = vsel %vm1195, %v1193, 0
        %v1200 = vsel %vm1195, %v1194, 0
        %1202 = vmatprep.subr.mxu0 %v733
        %1203 = vmatpush1.msra.mxu0 %v729
        %1204 = vmatprep.subr.mxu0 %v869
        %1205 = vmatpush1.msra.mxu0 %v865
        %1206 = vmatprep.subr.mxu0 %v1037
        %1207 = vmatpush1.msra.mxu0 %v1033
        %1208 = vmatprep.subr.mxu0 %v1173
        %1209 = vmatpush1.msra.mxu0 %v1169
        %1210 = vmatprep.subr.mxu0 0.0
        %1211 = vmatpush1.msra.mxu0 0.0
        %1212 = vmatprep.subr.mxu0 0.0
        %1213 = vmatpush1.msra.mxu0 0.0
        %1214 = vmatprep.subr.mxu0 0.0
        %1215 = vmatpush1.msra.mxu0 0.0
        %1216 = vmatprep.subr.mxu0 0.0
        %1217 = vmatpush1.msra.mxu0 0.0
        %1218 = vmatprep.subr.mxu0 0.0
        %1219 = vmatpush1.msra.mxu0 0.0
        %1220 = vmatprep.subr.mxu0 0.0
        %1221 = vmatpush1.msra.mxu0 0.0
        %1222 = vmatprep.subr.mxu0 0.0
        %1223 = vmatpush1.msra.mxu0 0.0
        %1224 = vmatprep.subr.mxu0 0.0
        %1225 = vmatpush1.msra.mxu0 0.0
        %1226 = vmatprep.subr.mxu0 0.0
        %1227 = vmatpush1.msra.mxu0 0.0
        %1228 = vmatprep.subr.mxu0 0.0
        %1229 = vmatpush1.msra.mxu0 0.0
        %1230 = vmatprep.subr.mxu0 0.0
        %1231 = vmatpush1.msra.mxu0 0.0
        %1232 = vmatprep.subr.mxu0 0.0
        %1233 = vmatpush1.msra.mxu0 0.0
        %1234 = vmatprep.subr.mxu0 0.0
        %1235 = vmatpush1.msra.mxu0 0.0
        %1236 = vmatprep.subr.mxu0 0.0
        %1237 = vmatpush1.msra.mxu0 0.0
        %1238 = vmatprep.subr.mxu0 0.0
        %1239 = vmatpush1.msra.mxu0 0.0
        %1240 = vmatprep.subr.mxu0 0.0
        %1241 = vmatpush1.msra.mxu0 0.0
        %1242 = vmatprep.subr.mxu0 0.0
        %1243 = vmatpush1.msra.mxu0 0.0
        %1244 = vmatprep.subr.mxu0 0.0
        %1245 = vmatpush1.msra.mxu0 0.0
        %1246 = vmatprep.subr.mxu0 0.0
        %1247 = vmatpush1.msra.mxu0 0.0
        %1248 = vmatprep.subr.mxu0 0.0
        %1249 = vmatpush1.msra.mxu0 0.0
        %1250 = vmatprep.subr.mxu0 0.0
        %1251 = vmatpush1.msra.mxu0 0.0
        %1252 = vmatprep.subr.mxu0 0.0
        %1253 = vmatpush1.msra.mxu0 0.0
        %1254 = vmatprep.subr.mxu0 0.0
        %1255 = vmatpush1.msra.mxu0 0.0
        %1256 = vmatprep.subr.mxu0 0.0
        %1257 = vmatpush1.msra.mxu0 0.0
        %1258 = vmatprep.subr.mxu0 0.0
        %1259 = vmatpush1.msra.mxu0 0.0
        %1260 = vmatprep.subr.mxu0 0.0
        %1261 = vmatpush1.msra.mxu0 0.0
        %1262 = vmatprep.subr.mxu0 0.0
        %1263 = vmatpush1.msra.mxu0 0.0
        %1264 = vmatprep.subr.mxu0 0.0
        %1265 = vmatpush1.msra.mxu0 0.0
        %1266 = vmatprep.mubr.f32.mxu0 0.0
        %1267 = vmatmul.mubr.f32.gmra.mrb[0].mxu0 %v1197
        %v1268 = vpop.f32.mrb[0].mxu0
        %v1269 = vadd.f32 0.0, %v1268
        %v1270 = vpop.f32.mrb[0].mxu0
        %v1271 = vadd.f32 0.0, %v1270
        %1272 = vmatprep.mubr.f32.mxu0 0.0
        %1273 = vmatmul.mubr.f32.gmra.mrb[0].mxu0 %v1200
        %v1274 = vpop.f32.mrb[0].mxu0
        %v1275 = vadd.f32 0.0, %v1274
        %v1276 = vpop.f32.mrb[0].mxu0
        %v1277 = vadd.f32 0.0, %v1276
        %1278 = vdwg.mxu0
        %1279 = vmatprep.subr.mxu0 %v734
        %1280 = vmatpush1.msra.mxu0 %v730
        %1281 = vmatprep.subr.mxu0 %v870
        %1282 = vmatpush1.msra.mxu0 %v866
        %1283 = vmatprep.subr.mxu0 %v1038
        %1284 = vmatpush1.msra.mxu0 %v1034
        %1285 = vmatprep.subr.mxu0 %v1174
        %1286 = vmatpush1.msra.mxu0 %v1170
        %1287 = vmatprep.subr.mxu0 0.0
        %1288 = vmatpush1.msra.mxu0 0.0
        %1289 = vmatprep.subr.mxu0 0.0
        %1290 = vmatpush1.msra.mxu0 0.0
        %1291 = vmatprep.subr.mxu0 0.0
        %1292 = vmatpush1.msra.mxu0 0.0
        %1293 = vmatprep.subr.mxu0 0.0
        %1294 = vmatpush1.msra.mxu0 0.0
        %1295 = vmatprep.subr.mxu0 0.0
        %1296 = vmatpush1.msra.mxu0 0.0
        %1297 = vmatprep.subr.mxu0 0.0
        %1298 = vmatpush1.msra.mxu0 0.0
        %1299 = vmatprep.subr.mxu0 0.0
        %1300 = vmatpush1.msra.mxu0 0.0
        %1301 = vmatprep.subr.mxu0 0.0
        %1302 = vmatpush1.msra.mxu0 0.0
        %1303 = vmatprep.subr.mxu0 0.0
        %1304 = vmatpush1.msra.mxu0 0.0
        %1305 = vmatprep.subr.mxu0 0.0
        %1306 = vmatpush1.msra.mxu0 0.0
        %1307 = vmatprep.subr.mxu0 0.0
        %1308 = vmatpush1.msra.mxu0 0.0
        %1309 = vmatprep.subr.mxu0 0.0
        %1310 = vmatpush1.msra.mxu0 0.0
        %1311 = vmatprep.subr.mxu0 0.0
        %1312 = vmatpush1.msra.mxu0 0.0
        %1313 = vmatprep.subr.mxu0 0.0
        %1314 = vmatpush1.msra.mxu0 0.0
        %1315 = vmatprep.subr.mxu0 0.0
        %1316 = vmatpush1.msra.mxu0 0.0
        %1317 = vmatprep.subr.mxu0 0.0
        %1318 = vmatpush1.msra.mxu0 0.0
        %1319 = vmatprep.subr.mxu0 0.0
        %1320 = vmatpush1.msra.mxu0 0.0
        %1321 = vmatprep.subr.mxu0 0.0
        %1322 = vmatpush1.msra.mxu0 0.0
        %1323 = vmatprep.subr.mxu0 0.0
        %1324 = vmatpush1.msra.mxu0 0.0
        %1325 = vmatprep.subr.mxu0 0.0
        %1326 = vmatpush1.msra.mxu0 0.0
        %1327 = vmatprep.subr.mxu0 0.0
        %1328 = vmatpush1.msra.mxu0 0.0
        %1329 = vmatprep.subr.mxu0 0.0
        %1330 = vmatpush1.msra.mxu0 0.0
        %1331 = vmatprep.subr.mxu0 0.0
        %1332 = vmatpush1.msra.mxu0 0.0
        %1333 = vmatprep.subr.mxu0 0.0
        %1334 = vmatpush1.msra.mxu0 0.0
        %1335 = vmatprep.subr.mxu0 0.0
        %1336 = vmatpush1.msra.mxu0 0.0
        %1337 = vmatprep.subr.mxu0 0.0
        %1338 = vmatpush1.msra.mxu0 0.0
        %1339 = vmatprep.subr.mxu0 0.0
        %1340 = vmatpush1.msra.mxu0 0.0
        %1341 = vmatprep.subr.mxu0 0.0
        %1342 = vmatpush1.msra.mxu0 0.0
        %1343 = vmatprep.mubr.f32.mxu0 0.0
        %1344 = vmatmul.mubr.f32.gmra.mrb[0].mxu0 %v1197
        %v1345 = vpop.f32.mrb[0].mxu0
        %v1346 = vadd.f32 0.0, %v1345
        %v1347 = vpop.f32.mrb[0].mxu0
        %v1348 = vadd.f32 0.0, %v1347
        %1349 = vmatprep.mubr.f32.mxu0 0.0
        %1350 = vmatmul.mubr.f32.gmra.mrb[0].mxu0 %v1200
        %v1351 = vpop.f32.mrb[0].mxu0
        %v1352 = vadd.f32 0.0, %v1351
        %v1353 = vpop.f32.mrb[0].mxu0
        %v1354 = vadd.f32 0.0, %v1353
        %1355 = vdwg.mxu0
        %1356 = vmatprep.subr.mxu0 %v735
        %1357 = vmatpush1.msra.mxu0 %v731
        %1358 = vmatprep.subr.mxu0 %v871
        %1359 = vmatpush1.msra.mxu0 %v867
        %1360 = vmatprep.subr.mxu0 %v1039
        %1361 = vmatpush1.msra.mxu0 %v1035
        %1362 = vmatprep.subr.mxu0 %v1175
        %1363 = vmatpush1.msra.mxu0 %v1171
        %1364 = vmatprep.subr.mxu0 0.0
        %1365 = vmatpush1.msra.mxu0 0.0
        %1366 = vmatprep.subr.mxu0 0.0
        %1367 = vmatpush1.msra.mxu0 0.0
        %1368 = vmatprep.subr.mxu0 0.0
        %1369 = vmatpush1.msra.mxu0 0.0
        %1370 = vmatprep.subr.mxu0 0.0
        %1371 = vmatpush1.msra.mxu0 0.0
        %1372 = vmatprep.subr.mxu0 0.0
        %1373 = vmatpush1.msra.mxu0 0.0
        %1374 = vmatprep.subr.mxu0 0.0
        %1375 = vmatpush1.msra.mxu0 0.0
        %1376 = vmatprep.subr.mxu0 0.0
        %1377 = vmatpush1.msra.mxu0 0.0
        %1378 = vmatprep.subr.mxu0 0.0
        %1379 = vmatpush1.msra.mxu0 0.0
        %1380 = vmatprep.subr.mxu0 0.0
        %1381 = vmatpush1.msra.mxu0 0.0
        %1382 = vmatprep.subr.mxu0 0.0
        %1383 = vmatpush1.msra.mxu0 0.0
        %1384 = vmatprep.subr.mxu0 0.0
        %1385 = vmatpush1.msra.mxu0 0.0
        %1386 = vmatprep.subr.mxu0 0.0
        %1387 = vmatpush1.msra.mxu0 0.0
        %1388 = vmatprep.subr.mxu0 0.0
        %1389 = vmatpush1.msra.mxu0 0.0
        %1390 = vmatprep.subr.mxu0 0.0
        %1391 = vmatpush1.msra.mxu0 0.0
        %1392 = vmatprep.subr.mxu0 0.0
        %1393 = vmatpush1.msra.mxu0 0.0
        %1394 = vmatprep.subr.mxu0 0.0
        %1395 = vmatpush1.msra.mxu0 0.0
        %1396 = vmatprep.subr.mxu0 0.0
        %1397 = vmatpush1.msra.mxu0 0.0
        %1398 = vmatprep.subr.mxu0 0.0
        %1399 = vmatpush1.msra.mxu0 0.0
        %1400 = vmatprep.subr.mxu0 0.0
        %1401 = vmatpush1.msra.mxu0 0.0
        %1402 = vmatprep.subr.mxu0 0.0
        %1403 = vmatpush1.msra.mxu0 0.0
        %1404 = vmatprep.subr.mxu0 0.0
        %1405 = vmatpush1.msra.mxu0 0.0
        %1406 = vmatprep.subr.mxu0 0.0
        %1407 = vmatpush1.msra.mxu0 0.0
        %1408 = vmatprep.subr.mxu0 0.0
        %1409 = vmatpush1.msra.mxu0 0.0
        %1410 = vmatprep.subr.mxu0 0.0
        %1411 = vmatpush1.msra.mxu0 0.0
        %1412 = vmatprep.subr.mxu0 0.0
        %1413 = vmatpush1.msra.mxu0 0.0
        %1414 = vmatprep.subr.mxu0 0.0
        %1415 = vmatpush1.msra.mxu0 0.0
        %1416 = vmatprep.subr.mxu0 0.0
        %1417 = vmatpush1.msra.mxu0 0.0
        %1418 = vmatprep.subr.mxu0 0.0
        %1419 = vmatpush1.msra.mxu0 0.0
        %1420 = vmatprep.mubr.f32.mxu0 0.0
        %1421 = vmatmul.mubr.f32.gmra.mrb[0].mxu0 %v1197
        %v1422 = vpop.f32.mrb[0].mxu0
        %v1423 = vadd.f32 0.0, %v1422
        %v1424 = vpop.f32.mrb[0].mxu0
        %v1425 = vadd.f32 0.0, %v1424
        %1426 = vmatprep.mubr.f32.mxu0 0.0
        %1427 = vmatmul.mubr.f32.gmra.mrb[0].mxu0 %v1200
        %v1428 = vpop.f32.mrb[0].mxu0
        %v1429 = vadd.f32 0.0, %v1428
        %v1430 = vpop.f32.mrb[0].mxu0
        %v1431 = vadd.f32 0.0, %v1430
        %1432 = vdwg.mxu0
        %1433 = vmatprep.subr.mxu0 %v736
        %1434 = vmatpush1.msra.mxu0 %v732
        %1435 = vmatprep.subr.mxu0 %v872
        %1436 = vmatpush1.msra.mxu0 %v868
        %1437 = vmatprep.subr.mxu0 %v1040
        %1438 = vmatpush1.msra.mxu0 %v1036
        %1439 = vmatprep.subr.mxu0 %v1176
        %1440 = vmatpush1.msra.mxu0 %v1172
        %1441 = vmatprep.subr.mxu0 0.0
        %1442 = vmatpush1.msra.mxu0 0.0
        %1443 = vmatprep.subr.mxu0 0.0
        %1444 = vmatpush1.msra.mxu0 0.0
        %1445 = vmatprep.subr.mxu0 0.0
        %1446 = vmatpush1.msra.mxu0 0.0
        %1447 = vmatprep.subr.mxu0 0.0
        %1448 = vmatpush1.msra.mxu0 0.0
        %1449 = vmatprep.subr.mxu0 0.0
        %1450 = vmatpush1.msra.mxu0 0.0
        %1451 = vmatprep.subr.mxu0 0.0
        %1452 = vmatpush1.msra.mxu0 0.0
        %1453 = vmatprep.subr.mxu0 0.0
        %1454 = vmatpush1.msra.mxu0 0.0
        %1455 = vmatprep.subr.mxu0 0.0
        %1456 = vmatpush1.msra.mxu0 0.0
        %1457 = vmatprep.subr.mxu0 0.0
        %1458 = vmatpush1.msra.mxu0 0.0
        %1459 = vmatprep.subr.mxu0 0.0
        %1460 = vmatpush1.msra.mxu0 0.0
        %1461 = vmatprep.subr.mxu0 0.0
        %1462 = vmatpush1.msra.mxu0 0.0
        %1463 = vmatprep.subr.mxu0 0.0
        %1464 = vmatpush1.msra.mxu0 0.0
        %1465 = vmatprep.subr.mxu0 0.0
        %1466 = vmatpush1.msra.mxu0 0.0
        %1467 = vmatprep.subr.mxu0 0.0
        %1468 = vmatpush1.msra.mxu0 0.0
        %1469 = vmatprep.subr.mxu0 0.0
        %1470 = vmatpush1.msra.mxu0 0.0
        %1471 = vmatprep.subr.mxu0 0.0
        %1472 = vmatpush1.msra.mxu0 0.0
        %1473 = vmatprep.subr.mxu0 0.0
        %1474 = vmatpush1.msra.mxu0 0.0
        %1475 = vmatprep.subr.mxu0 0.0
        %1476 = vmatpush1.msra.mxu0 0.0
        %1477 = vmatprep.subr.mxu0 0.0
        %1478 = vmatpush1.msra.mxu0 0.0
        %1479 = vmatprep.subr.mxu0 0.0
        %1480 = vmatpush1.msra.mxu0 0.0
        %1481 = vmatprep.subr.mxu0 0.0
        %1482 = vmatpush1.msra.mxu0 0.0
        %1483 = vmatprep.subr.mxu0 0.0
        %1484 = vmatpush1.msra.mxu0 0.0
        %1485 = vmatprep.subr.mxu0 0.0
        %1486 = vmatpush1.msra.mxu0 0.0
        %1487 = vmatprep.subr.mxu0 0.0
        %1488 = vmatpush1.msra.mxu0 0.0
        %1489 = vmatprep.subr.mxu0 0.0
        %1490 = vmatpush1.msra.mxu0 0.0
        %1491 = vmatprep.subr.mxu0 0.0
        %1492 = vmatpush1.msra.mxu0 0.0
        %1493 = vmatprep.subr.mxu0 0.0
        %1494 = vmatpush1.msra.mxu0 0.0
        %1495 = vmatprep.subr.mxu0 0.0
        %1496 = vmatpush1.msra.mxu0 0.0
        %1497 = vmatprep.mubr.f32.mxu0 0.0
        %1498 = vmatmul.mubr.f32.gmra.mrb[0].mxu0 %v1197
        %v1499 = vpop.f32.mrb[0].mxu0
        %v1500 = vadd.f32 0.0, %v1499
        %v1501 = vpop.f32.mrb[0].mxu0
        %v1502 = vadd.f32 0.0, %v1501
        %1503 = vmatprep.mubr.f32.mxu0 0.0
        %1504 = vmatmul.mubr.f32.gmra.mrb[0].mxu0 %v1200
        %v1505 = vpop.f32.mrb[0].mxu0
        %v1506 = vadd.f32 0.0, %v1505
        %v1507 = vpop.f32.mrb[0].mxu0
        %v1508 = vadd.f32 0.0, %v1507
        %1509 = vdwg.mxu0
        %v1510 = vcombine.low %v1269, %v1346
        %v1511 = vcombine.high %v1269, %v1346
        %v1513 = vunpack.c.l.s4 1983009808
        %v1514 = vunpack.c.0.s8 %v1513
        %v1515 = vlaneseq
        %v1516 = vshrl.u32 %v1515, 7
        %v1517 = vsub.s32 %v1514, %v1516
        %v1518 = vrot.slane %v1510, %v1517
        %v1520 = vunpack.c.l.s4 1983009808
        %v1521 = vunpack.c.0.s8 %v1520
        %v1522 = vlaneseq
        %v1523 = vshrl.u32 %v1522, 7
        %v1524 = vsub.s32 %v1521, %v1523
        %v1525 = vrot.slane %v1511, %v1524
        %v1526 = vcombine.low %v1271, %v1348
        %v1527 = vcombine.high %v1271, %v1348
        %v1529 = vunpack.c.l.s4 1983009808
        %v1530 = vunpack.c.0.s8 %v1529
        %v1531 = vlaneseq
        %v1532 = vshrl.u32 %v1531, 7
        %v1533 = vsub.s32 %v1530, %v1532
        %v1534 = vrot.slane %v1526, %v1533
        %v1536 = vunpack.c.l.s4 1983009808
        %v1537 = vunpack.c.0.s8 %v1536
        %v1538 = vlaneseq
        %v1539 = vshrl.u32 %v1538, 7
        %v1540 = vsub.s32 %v1537, %v1539
        %v1541 = vrot.slane %v1527, %v1540
        %v1542 = vcombine.low %v1423, %v1500
        %v1543 = vcombine.high %v1423, %v1500
        %v1545 = vunpack.c.l.s4 1983009808
        %v1546 = vunpack.c.0.s8 %v1545
        %v1547 = vlaneseq
        %v1548 = vshrl.u32 %v1547, 7
        %v1549 = vsub.s32 %v1546, %v1548
        %v1550 = vrot.slane %v1542, %v1549
        %v1552 = vunpack.c.l.s4 1983009808
        %v1553 = vunpack.c.0.s8 %v1552
        %v1554 = vlaneseq
        %v1555 = vshrl.u32 %v1554, 7
        %v1556 = vsub.s32 %v1553, %v1555
        %v1557 = vrot.slane %v1543, %v1556
        %v1558 = vcombine.low %v1425, %v1502
        %v1559 = vcombine.high %v1425, %v1502
        %v1561 = vunpack.c.l.s4 1983009808
        %v1562 = vunpack.c.0.s8 %v1561
        %v1563 = vlaneseq
        %v1564 = vshrl.u32 %v1563, 7
        %v1565 = vsub.s32 %v1562, %v1564
        %v1566 = vrot.slane %v1558, %v1565
        %v1568 = vunpack.c.l.s4 1983009808
        %v1569 = vunpack.c.0.s8 %v1568
        %v1570 = vlaneseq
        %v1571 = vshrl.u32 %v1570, 7
        %v1572 = vsub.s32 %v1569, %v1571
        %v1573 = vrot.slane %v1559, %v1572
        %v1574 = vcombine.low %v1518, %v1534
        %v1575 = vcombine.high %v1518, %v1534
        %v1577 = vunpack.c.l.s4 1934713408
        %v1578 = vunpack.c.0.s8 %v1577
        %v1579 = vlaneseq
        %v1580 = vshrl.u32 %v1579, 7
        %v1581 = vsub.s32 %v1578, %v1580
        %v1582 = vrot.slane %v1574, %v1581
        %v1584 = vunpack.c.l.s4 1934713408
        %v1585 = vunpack.c.0.s8 %v1584
        %v1586 = vlaneseq
        %v1587 = vshrl.u32 %v1586, 7
        %v1588 = vsub.s32 %v1585, %v1587
        %v1589 = vrot.slane %v1575, %v1588
        %v1590 = vcombine.low %v1525, %v1541
        %v1591 = vcombine.high %v1525, %v1541
        %v1593 = vunpack.c.l.s4 1934713408
        %v1594 = vunpack.c.0.s8 %v1593
        %v1595 = vlaneseq
        %v1596 = vshrl.u32 %v1595, 7
        %v1597 = vsub.s32 %v1594, %v1596
        %v1598 = vrot.slane %v1590, %v1597
        %v1600 = vunpack.c.l.s4 1934713408
        %v1601 = vunpack.c.0.s8 %v1600
        %v1602 = vlaneseq
        %v1603 = vshrl.u32 %v1602, 7
        %v1604 = vsub.s32 %v1601, %v1603
        %v1605 = vrot.slane %v1591, %v1604
        %v1606 = vcombine.low %v1550, %v1566
        %v1607 = vcombine.high %v1550, %v1566
        %v1609 = vunpack.c.l.s4 1934713408
        %v1610 = vunpack.c.0.s8 %v1609
        %v1611 = vlaneseq
        %v1612 = vshrl.u32 %v1611, 7
        %v1613 = vsub.s32 %v1610, %v1612
        %v1614 = vrot.slane %v1606, %v1613
        %v1616 = vunpack.c.l.s4 1934713408
        %v1617 = vunpack.c.0.s8 %v1616
        %v1618 = vlaneseq
        %v1619 = vshrl.u32 %v1618, 7
        %v1620 = vsub.s32 %v1617, %v1619
        %v1621 = vrot.slane %v1607, %v1620
        %v1622 = vcombine.low %v1557, %v1573
        %v1623 = vcombine.high %v1557, %v1573
        %v1625 = vunpack.c.l.s4 1934713408
        %v1626 = vunpack.c.0.s8 %v1625
        %v1627 = vlaneseq
        %v1628 = vshrl.u32 %v1627, 7
        %v1629 = vsub.s32 %v1626, %v1628
        %v1630 = vrot.slane %v1622, %v1629
        %v1632 = vunpack.c.l.s4 1934713408
        %v1633 = vunpack.c.0.s8 %v1632
        %v1634 = vlaneseq
        %v1635 = vshrl.u32 %v1634, 7
        %v1636 = vsub.s32 %v1633, %v1635
        %v1637 = vrot.slane %v1623, %v1636
        %v1638 = vcombine.low %v1582, %v1614
        %v1639 = vcombine.high %v1582, %v1614
        %v1640 = vcombine.low %v1589, %v1621
        %v1641 = vcombine.high %v1589, %v1621
        %v1642 = vcombine.low %v1598, %v1630
        %v1643 = vcombine.high %v1598, %v1630
        %v1644 = vcombine.low %v1605, %v1637
        %v1645 = vcombine.high %v1605, %v1637
        %v1646 = vcombine.low %v1275, %v1352
        %v1647 = vcombine.high %v1275, %v1352
        %v1649 = vunpack.c.l.s4 1983009808
        %v1650 = vunpack.c.0.s8 %v1649
        %v1651 = vlaneseq
        %v1652 = vshrl.u32 %v1651, 7
        %v1653 = vsub.s32 %v1650, %v1652
        %v1654 = vrot.slane %v1646, %v1653
        %v1656 = vunpack.c.l.s4 1983009808
        %v1657 = vunpack.c.0.s8 %v1656
        %v1658 = vlaneseq
        %v1659 = vshrl.u32 %v1658, 7
        %v1660 = vsub.s32 %v1657, %v1659
        %v1661 = vrot.slane %v1647, %v1660
        %v1662 = vcombine.low %v1277, %v1354
        %v1663 = vcombine.high %v1277, %v1354
        %v1665 = vunpack.c.l.s4 1983009808
        %v1666 = vunpack.c.0.s8 %v1665
        %v1667 = vlaneseq
        %v1668 = vshrl.u32 %v1667, 7
        %v1669 = vsub.s32 %v1666, %v1668
        %v1670 = vrot.slane %v1662, %v1669
        %v1672 = vunpack.c.l.s4 1983009808
        %v1673 = vunpack.c.0.s8 %v1672
        %v1674 = vlaneseq
        %v1675 = vshrl.u32 %v1674, 7
        %v1676 = vsub.s32 %v1673, %v1675
        %v1677 = vrot.slane %v1663, %v1676
        %v1678 = vcombine.low %v1429, %v1506
        %v1679 = vcombine.high %v1429, %v1506
        %v1681 = vunpack.c.l.s4 1983009808
        %v1682 = vunpack.c.0.s8 %v1681
        %v1683 = vlaneseq
        %v1684 = vshrl.u32 %v1683, 7
        %v1685 = vsub.s32 %v1682, %v1684
        %v1686 = vrot.slane %v1678, %v1685
        %v1688 = vunpack.c.l.s4 1983009808
        %v1689 = vunpack.c.0.s8 %v1688
        %v1690 = vlaneseq
        %v1691 = vshrl.u32 %v1690, 7
        %v1692 = vsub.s32 %v1689, %v1691
        %v1693 = vrot.slane %v1679, %v1692
        %v1694 = vcombine.low %v1431, %v1508
        %v1695 = vcombine.high %v1431, %v1508
        %v1697 = vunpack.c.l.s4 1983009808
        %v1698 = vunpack.c.0.s8 %v1697
        %v1699 = vlaneseq
        %v1700 = vshrl.u32 %v1699, 7
        %v1701 = vsub.s32 %v1698, %v1700
        %v1702 = vrot.slane %v1694, %v1701
        %v1704 = vunpack.c.l.s4 1983009808
        %v1705 = vunpack.c.0.s8 %v1704
        %v1706 = vlaneseq
        %v1707 = vshrl.u32 %v1706, 7
        %v1708 = vsub.s32 %v1705, %v1707
        %v1709 = vrot.slane %v1695, %v1708
        %v1710 = vcombine.low %v1654, %v1670
        %v1711 = vcombine.high %v1654, %v1670
        %v1713 = vunpack.c.l.s4 1934713408
        %v1714 = vunpack.c.0.s8 %v1713
        %v1715 = vlaneseq
        %v1716 = vshrl.u32 %v1715, 7
        %v1717 = vsub.s32 %v1714, %v1716
        %v1718 = vrot.slane %v1710, %v1717
        %v1720 = vunpack.c.l.s4 1934713408
        %v1721 = vunpack.c.0.s8 %v1720
        %v1722 = vlaneseq
        %v1723 = vshrl.u32 %v1722, 7
        %v1724 = vsub.s32 %v1721, %v1723
        %v1725 = vrot.slane %v1711, %v1724
        %v1726 = vcombine.low %v1661, %v1677
        %v1727 = vcombine.high %v1661, %v1677
        %v1729 = vunpack.c.l.s4 1934713408
        %v1730 = vunpack.c.0.s8 %v1729
        %v1731 = vlaneseq
        %v1732 = vshrl.u32 %v1731, 7
        %v1733 = vsub.s32 %v1730, %v1732
        %v1734 = vrot.slane %v1726, %v1733
        %v1736 = vunpack.c.l.s4 1934713408
        %v1737 = vunpack.c.0.s8 %v1736
        %v1738 = vlaneseq
        %v1739 = vshrl.u32 %v1738, 7
        %v1740 = vsub.s32 %v1737, %v1739
        %v1741 = vrot.slane %v1727, %v1740
        %v1742 = vcombine.low %v1686, %v1702
        %v1743 = vcombine.high %v1686, %v1702
        %v1745 = vunpack.c.l.s4 1934713408
        %v1746 = vunpack.c.0.s8 %v1745
        %v1747 = vlaneseq
        %v1748 = vshrl.u32 %v1747, 7
        %v1749 = vsub.s32 %v1746, %v1748
        %v1750 = vrot.slane %v1742, %v1749
        %v1752 = vunpack.c.l.s4 1934713408
        %v1753 = vunpack.c.0.s8 %v1752
        %v1754 = vlaneseq
        %v1755 = vshrl.u32 %v1754, 7
        %v1756 = vsub.s32 %v1753, %v1755
        %v1757 = vrot.slane %v1743, %v1756
        %v1758 = vcombine.low %v1693, %v1709
        %v1759 = vcombine.high %v1693, %v1709
        %v1761 = vunpack.c.l.s4 1934713408
        %v1762 = vunpack.c.0.s8 %v1761
        %v1763 = vlaneseq
        %v1764 = vshrl.u32 %v1763, 7
        %v1765 = vsub.s32 %v1762, %v1764
        %v1766 = vrot.slane %v1758, %v1765
        %v1768 = vunpack.c.l.s4 1934713408
        %v1769 = vunpack.c.0.s8 %v1768
        %v1770 = vlaneseq
        %v1771 = vshrl.u32 %v1770, 7
        %v1772 = vsub.s32 %v1769, %v1771
        %v1773 = vrot.slane %v1759, %v1772
        %v1774 = vcombine.low %v1718, %v1750
        %v1775 = vcombine.high %v1718, %v1750
        %v1776 = vcombine.low %v1725, %v1757
        %v1777 = vcombine.high %v1725, %v1757
        %v1778 = vcombine.low %v1734, %v1766
        %v1779 = vcombine.high %v1734, %v1766
        %v1780 = vcombine.low %v1741, %v1773
        %v1781 = vcombine.high %v1741, %v1773
        %v1782 = vld [vmem:[%s4] sm:$0x1]
        %v1783 = vld [vmem:[%s4 + $0x1] sm:$0x1]
        %v1784 = vld [vmem:[%s4 + $0x2] sm:$0x1]
        %v1785 = vld [vmem:[%s4 + $0x3] sm:$0x1]
        %v1786 = vld [vmem:[%s4 + $0x4] sm:$0x1]
        %v1787 = vld [vmem:[%s4 + $0x5] sm:$0x1]
        %v1788 = vld [vmem:[%s4 + $0x6] sm:$0x1]
        %v1789 = vld [vmem:[%s4 + $0x7] sm:$0x1]
        %v1790 = vld [vmem:[%s4 + $0x8] sm:$0x1]
        %v1791 = vld [vmem:[%s4 + $0x9] sm:$0x1]
        %v1792 = vld [vmem:[%s4 + $0xa] sm:$0x1]
        %v1793 = vld [vmem:[%s4 + $0xb] sm:$0x1]
        %v1794 = vld [vmem:[%s4 + $0xc] sm:$0x1]
        %v1795 = vld [vmem:[%s4 + $0xd] sm:$0x1]
        %v1796 = vld [vmem:[%s4 + $0xe] sm:$0x1]
        %v1797 = vld [vmem:[%s4 + $0xf] sm:$0x1]
        %v1814 = vlaneseq
        %v1815 = vshrl.u32 %v1814, 7
        %v1816 = vsub.s32 0, %v1815
        %v1817 = vrot.slane %v1782, %v1816
        %v1818 = vlaneseq
        %v1819 = vshrl.u32 %v1818, 7
        %v1820 = vsub.s32 0, %v1819
        %v1821 = vrot.slane %v1783, %v1820
        %v1822 = vlaneseq
        %v1823 = vshrl.u32 %v1822, 7
        %v1824 = vsub.s32 0, %v1823
        %v1825 = vrot.slane %v1784, %v1824
        %v1826 = vlaneseq
        %v1827 = vshrl.u32 %v1826, 7
        %v1828 = vsub.s32 0, %v1827
        %v1829 = vrot.slane %v1785, %v1828
        %v1830 = vlaneseq
        %v1831 = vshrl.u32 %v1830, 7
        %v1832 = vsub.s32 0, %v1831
        %v1833 = vrot.slane %v1786, %v1832
        %v1834 = vlaneseq
        %v1835 = vshrl.u32 %v1834, 7
        %v1836 = vsub.s32 0, %v1835
        %v1837 = vrot.slane %v1787, %v1836
        %v1838 = vlaneseq
        %v1839 = vshrl.u32 %v1838, 7
        %v1840 = vsub.s32 0, %v1839
        %v1841 = vrot.slane %v1788, %v1840
        %v1842 = vlaneseq
        %v1843 = vshrl.u32 %v1842, 7
        %v1844 = vsub.s32 0, %v1843
        %v1845 = vrot.slane %v1789, %v1844
        %v1846 = vlaneseq
        %v1847 = vshrl.u32 %v1846, 7
        %v1848 = vsub.s32 0, %v1847
        %v1849 = vrot.slane %v1790, %v1848
        %v1850 = vlaneseq
        %v1851 = vshrl.u32 %v1850, 7
        %v1852 = vsub.s32 0, %v1851
        %v1853 = vrot.slane %v1791, %v1852
        %v1854 = vlaneseq
        %v1855 = vshrl.u32 %v1854, 7
        %v1856 = vsub.s32 0, %v1855
        %v1857 = vrot.slane %v1792, %v1856
        %v1858 = vlaneseq
        %v1859 = vshrl.u32 %v1858, 7
        %v1860 = vsub.s32 0, %v1859
        %v1861 = vrot.slane %v1793, %v1860
        %v1862 = vlaneseq
        %v1863 = vshrl.u32 %v1862, 7
        %v1864 = vsub.s32 0, %v1863
        %v1865 = vrot.slane %v1794, %v1864
        %v1866 = vlaneseq
        %v1867 = vshrl.u32 %v1866, 7
        %v1868 = vsub.s32 0, %v1867
        %v1869 = vrot.slane %v1795, %v1868
        %v1870 = vlaneseq
        %v1871 = vshrl.u32 %v1870, 7
        %v1872 = vsub.s32 0, %v1871
        %v1873 = vrot.slane %v1796, %v1872
        %v1874 = vlaneseq
        %v1875 = vshrl.u32 %v1874, 7
        %v1876 = vsub.s32 0, %v1875
        %v1877 = vrot.slane %v1797, %v1876
        %v1894 = vadd.f32 %v1638, %v1817
        %v1895 = vadd.f32 %v1639, %v1821
        %v1896 = vadd.f32 %v1640, %v1825
        %v1897 = vadd.f32 %v1641, %v1829
        %v1898 = vadd.f32 %v1642, %v1833
        %v1899 = vadd.f32 %v1643, %v1837
        %v1900 = vadd.f32 %v1644, %v1841
        %v1901 = vadd.f32 %v1645, %v1845
        %v1902 = vadd.f32 %v1774, %v1849
        %v1903 = vadd.f32 %v1775, %v1853
        %v1904 = vadd.f32 %v1776, %v1857
        %v1905 = vadd.f32 %v1777, %v1861
        %v1906 = vadd.f32 %v1778, %v1865
        %v1907 = vadd.f32 %v1779, %v1869
        %v1908 = vadd.f32 %v1780, %v1873
        %v1909 = vadd.f32 %v1781, %v1877
        %v1910 = vmax.f32 %v1894, 0.0
        %v1911 = vmax.f32 %v1895, 0.0
        %v1912 = vmax.f32 %v1896, 0.0
        %v1913 = vmax.f32 %v1897, 0.0
        %v1914 = vmax.f32 %v1898, 0.0
        %v1915 = vmax.f32 %v1899, 0.0
        %v1916 = vmax.f32 %v1900, 0.0
        %v1917 = vmax.f32 %v1901, 0.0
        %v1918 = vmax.f32 %v1902, 0.0
        %v1919 = vmax.f32 %v1903, 0.0
        %v1920 = vmax.f32 %v1904, 0.0
        %v1921 = vmax.f32 %v1905, 0.0
        %v1922 = vmax.f32 %v1906, 0.0
        %v1923 = vmax.f32 %v1907, 0.0
        %v1924 = vmax.f32 %v1908, 0.0
        %v1925 = vmax.f32 %v1909, 0.0
        %v1942 = vrot.slane %v1910, 7
        %v1943 = vrot.slane %v1911, 7
        %v1944 = vrot.slane %v1912, 7
        %v1945 = vrot.slane %v1913, 7
        %v1946 = vrot.slane %v1914, 7
        %v1947 = vrot.slane %v1915, 7
        %v1948 = vrot.slane %v1916, 7
        %v1949 = vrot.slane %v1917, 7
        %v1950 = vrot.slane %v1918, 7
        %v1951 = vrot.slane %v1919, 7
        %v1952 = vrot.slane %v1920, 7
        %v1953 = vrot.slane %v1921, 7
        %v1954 = vrot.slane %v1922, 7
        %v1955 = vrot.slane %v1923, 7
        %v1956 = vrot.slane %v1924, 7
        %v1957 = vrot.slane %v1925, 7
        %vm1974 = vcmask 1040384
        %v1975 = vsel %vm1974, 0.0, %v1942
        %v1976 = vsel %vm1974, 0.0, %v1943
        %v1977 = vsel %vm1974, 0.0, %v1944
        %v1978 = vsel %vm1974, 0.0, %v1945
        %v1979 = vsel %vm1974, 0.0, %v1946
        %v1980 = vsel %vm1974, 0.0, %v1947
        %v1981 = vsel %vm1974, 0.0, %v1948
        %v1982 = vsel %vm1974, 0.0, %v1949
        %v1983 = vsel %vm1974, 0.0, %v1950
        %v1984 = vsel %vm1974, 0.0, %v1951
        %v1985 = vsel %vm1974, 0.0, %v1952
        %v1986 = vsel %vm1974, 0.0, %v1953
        %v1987 = vsel %vm1974, 0.0, %v1954
        %v1988 = vsel %vm1974, 0.0, %v1955
        %v1989 = vsel %vm1974, 0.0, %v1956
        %v1990 = vsel %vm1974, 0.0, %v1957
        %v1991 = vsel %vm1974, %v1942, 0.0
        %v1992 = vsel %vm1974, %v1943, 0.0
        %v1993 = vsel %vm1974, %v1944, 0.0
        %v1994 = vsel %vm1974, %v1945, 0.0
        %v1995 = vsel %vm1974, %v1946, 0.0
        %v1996 = vsel %vm1974, %v1947, 0.0
        %v1997 = vsel %vm1974, %v1948, 0.0
        %v1998 = vsel %vm1974, %v1949, 0.0
        %v1999 = vsel %vm1974, %v1950, 0.0
        %v2000 = vsel %vm1974, %v1951, 0.0
        %v2001 = vsel %vm1974, %v1952, 0.0
        %v2002 = vsel %vm1974, %v1953, 0.0
        %v2003 = vsel %vm1974, %v1954, 0.0
        %v2004 = vsel %vm1974, %v1955, 0.0
        %v2005 = vsel %vm1974, %v1956, 0.0
        %v2006 = vsel %vm1974, %v1957, 0.0
        %v2007 = vpack.c.bf16 %v1976, %v1975
        %v2008 = vpack.c.bf16 %v1978, %v1977
        %v2009 = vpack.c.bf16 %v1980, %v1979
        %v2010 = vpack.c.bf16 %v1982, %v1981
        %v2011 = vpack.c.bf16 %v1984, %v1983
        %v2012 = vpack.c.bf16 %v1986, %v1985
        %v2013 = vpack.c.bf16 %v1988, %v1987
        %v2014 = vpack.c.bf16 %v1990, %v1989
        %v2015 = vld [vmem:[#allocation2] sm:$0xf]
        %v2016 = vld [vmem:[#allocation2 + $0x4] sm:$0xf]
        %v2017 = vld [vmem:[#allocation2 + $0x8] sm:$0xf]
        %v2018 = vld [vmem:[#allocation2 + $0xc] sm:$0xf]
        %v2019 = vld [vmem:[#allocation2 + $0x10] sm:$0xf]
        %v2020 = vld [vmem:[#allocation2 + $0x14] sm:$0xf]
        %v2021 = vld [vmem:[#allocation2 + $0x18] sm:$0xf]
        %v2022 = vld [vmem:[#allocation2 + $0x1c] sm:$0xf]
        %v2023 = vld [vmem:[#allocation2 + $0x20] sm:$0xf]
        %v2024 = vld [vmem:[#allocation2 + $0x24] sm:$0xf]
        %v2025 = vld [vmem:[#allocation2 + $0x28] sm:$0xf]
        %v2026 = vld [vmem:[#allocation2 + $0x2c] sm:$0xf]
        %v2027 = vld [vmem:[#allocation2 + $0x30] sm:$0xf]
        %v2028 = vld [vmem:[#allocation2 + $0x34] sm:$0xf]
        %v2029 = vld [vmem:[#allocation2 + $0x38] sm:$0xf]
        %v2030 = vld [vmem:[#allocation2 + $0x3c] sm:$0xf]
        %vm2063 = vcmask 1046528
        %v2064 = vrot.slane %v1975, 1
        %v2065 = vrot.slane %v1991, 1
        %v2066 = vsel %vm2063, %v2064, %v2065
        %v2067 = vrot.slane %v1976, 1
        %v2068 = vrot.slane %v1992, 1
        %v2069 = vsel %vm2063, %v2067, %v2068
        %v2070 = vrot.slane %v1977, 1
        %v2071 = vrot.slane %v1993, 1
        %v2072 = vsel %vm2063, %v2070, %v2071
        %v2073 = vrot.slane %v1978, 1
        %v2074 = vrot.slane %v1994, 1
        %v2075 = vsel %vm2063, %v2073, %v2074
        %v2076 = vrot.slane %v1979, 1
        %v2077 = vrot.slane %v1995, 1
        %v2078 = vsel %vm2063, %v2076, %v2077
        %v2079 = vrot.slane %v1980, 1
        %v2080 = vrot.slane %v1996, 1
        %v2081 = vsel %vm2063, %v2079, %v2080
        %v2082 = vrot.slane %v1981, 1
        %v2083 = vrot.slane %v1997, 1
        %v2084 = vsel %vm2063, %v2082, %v2083
        %v2085 = vrot.slane %v1982, 1
        %v2086 = vrot.slane %v1998, 1
        %v2087 = vsel %vm2063, %v2085, %v2086
        %v2088 = vrot.slane %v1983, 1
        %v2089 = vrot.slane %v1999, 1
        %v2090 = vsel %vm2063, %v2088, %v2089
        %v2091 = vrot.slane %v1984, 1
        %v2092 = vrot.slane %v2000, 1
        %v2093 = vsel %vm2063, %v2091, %v2092
        %v2094 = vrot.slane %v1985, 1
        %v2095 = vrot.slane %v2001, 1
        %v2096 = vsel %vm2063, %v2094, %v2095
        %v2097 = vrot.slane %v1986, 1
        %v2098 = vrot.slane %v2002, 1
        %v2099 = vsel %vm2063, %v2097, %v2098
        %v2100 = vrot.slane %v1987, 1
        %v2101 = vrot.slane %v2003, 1
        %v2102 = vsel %vm2063, %v2100, %v2101
        %v2103 = vrot.slane %v1988, 1
        %v2104 = vrot.slane %v2004, 1
        %v2105 = vsel %vm2063, %v2103, %v2104
        %v2106 = vrot.slane %v1989, 1
        %v2107 = vrot.slane %v2005, 1
        %v2108 = vsel %vm2063, %v2106, %v2107
        %v2109 = vrot.slane %v1990, 1
        %v2110 = vrot.slane %v2006, 1
        %v2111 = vsel %vm2063, %v2109, %v2110
        %v2128 = vpack.c.bf16 %v2069, %v2066
        %v2129 = vpack.c.bf16 %v2075, %v2072
        %v2130 = vpack.c.bf16 %v2081, %v2078
        %v2131 = vpack.c.bf16 %v2087, %v2084
        %v2132 = vpack.c.bf16 %v2093, %v2090
        %v2133 = vpack.c.bf16 %v2099, %v2096
        %v2134 = vpack.c.bf16 %v2105, %v2102
        %v2135 = vpack.c.bf16 %v2111, %v2108
        %s2136 = scalar_lea.vmem [#allocation2], 64
        %v2137 = vld [vmem:[%s2136] sm:$0xf]
        %v2138 = vld [vmem:[%s2136 + $0x4] sm:$0xf]
        %v2139 = vld [vmem:[%s2136 + $0x8] sm:$0xf]
        %v2140 = vld [vmem:[%s2136 + $0xc] sm:$0xf]
        %v2141 = vld [vmem:[%s2136 + $0x10] sm:$0xf]
        %v2142 = vld [vmem:[%s2136 + $0x14] sm:$0xf]
        %v2143 = vld [vmem:[%s2136 + $0x18] sm:$0xf]
        %v2144 = vld [vmem:[%s2136 + $0x1c] sm:$0xf]
        %v2145 = vld [vmem:[%s2136 + $0x20] sm:$0xf]
        %v2146 = vld [vmem:[%s2136 + $0x24] sm:$0xf]
        %v2147 = vld [vmem:[%s2136 + $0x28] sm:$0xf]
        %v2148 = vld [vmem:[%s2136 + $0x2c] sm:$0xf]
        %v2149 = vld [vmem:[%s2136 + $0x30] sm:$0xf]
        %v2150 = vld [vmem:[%s2136 + $0x34] sm:$0xf]
        %v2151 = vld [vmem:[%s2136 + $0x38] sm:$0xf]
        %v2152 = vld [vmem:[%s2136 + $0x3c] sm:$0xf]
        %v2169 = vunpack.c.l.b16 %v2137
        %v2170 = vunpack.c.l.b16 %v2138
        %v2171 = vunpack.c.l.b16 %v2139
        %v2172 = vunpack.c.l.b16 %v2140
        %v2173 = vunpack.c.l.b16 %v2141
        %v2174 = vunpack.c.l.b16 %v2142
        %v2175 = vunpack.c.l.b16 %v2143
        %v2176 = vunpack.c.l.b16 %v2144
        %v2177 = vunpack.c.l.b16 %v2145
        %v2178 = vunpack.c.l.b16 %v2146
        %v2179 = vunpack.c.l.b16 %v2147
        %v2180 = vunpack.c.l.b16 %v2148
        %v2181 = vunpack.c.l.b16 %v2149
        %v2182 = vunpack.c.l.b16 %v2150
        %v2183 = vunpack.c.l.b16 %v2151
        %v2184 = vunpack.c.l.b16 %v2152
        %v2185 = vpack.c.b16 %v2170, %v2169
        %v2186 = vpack.c.b16 %v2172, %v2171
        %v2187 = vpack.c.b16 %v2174, %v2173
        %v2188 = vpack.c.b16 %v2176, %v2175
        %v2189 = vpack.c.b16 %v2178, %v2177
        %v2190 = vpack.c.b16 %v2180, %v2179
        %v2191 = vpack.c.b16 %v2182, %v2181
        %v2192 = vpack.c.b16 %v2184, %v2183
        %2201 = vmatprep.subr.bf16.mxu0 0
        %2202 = vmatpush1.bf16.msra.mxu0 %v2185
        %2203 = vmatprep.subr.bf16.mxu0 0
        %2204 = vmatpush1.bf16.msra.mxu0 %v2186
        %2205 = vmatprep.subr.bf16.mxu0 0
        %2206 = vmatpush1.bf16.msra.mxu0 %v2187
        %2207 = vmatprep.subr.bf16.mxu0 0
        %2208 = vmatpush1.bf16.msra.mxu0 %v2188
        %2209 = vmatprep.subr.bf16.mxu0 0
        %2210 = vmatpush1.bf16.msra.mxu0 %v2189
        %2211 = vmatprep.subr.bf16.mxu0 0
        %2212 = vmatpush1.bf16.msra.mxu0 %v2190
        %2213 = vmatprep.subr.bf16.mxu0 0
        %2214 = vmatpush1.bf16.msra.mxu0 %v2191
        %2215 = vmatprep.subr.bf16.mxu0 0
        %2216 = vmatpush1.bf16.msra.mxu0 %v2192
        %2217 = vmatprep.subr.bf16.mxu0 0
        %2218 = vmatpush1.bf16.msra.mxu0 0
        %2219 = vmatprep.subr.bf16.mxu0 0
        %2220 = vmatpush1.bf16.msra.mxu0 0
        %2221 = vmatprep.subr.bf16.mxu0 0
        %2222 = vmatpush1.bf16.msra.mxu0 0
        %2223 = vmatprep.subr.bf16.mxu0 0
        %2224 = vmatpush1.bf16.msra.mxu0 0
        %2225 = vmatprep.subr.bf16.mxu0 0
        %2226 = vmatpush1.bf16.msra.mxu0 0
        %2227 = vmatprep.subr.bf16.mxu0 0
        %2228 = vmatpush1.bf16.msra.mxu0 0
        %2229 = vmatprep.subr.bf16.mxu0 0
        %2230 = vmatpush1.bf16.msra.mxu0 0
        %2231 = vmatprep.subr.bf16.mxu0 0
        %2232 = vmatpush1.bf16.msra.mxu0 0
        %2233 = vmatprep.mubr.bf16.mxu0 0
        %2234 = vmatmul.mubr.bf16.gmra.mrb[0].mxu0 %v2128
        %v2235 = vpop.f32.mrb[0].mxu0
        %v2236 = vadd.f32 0.0, %v2235
        %v2237 = vpop.f32.mrb[0].mxu0
        %v2238 = vpop.f32.mrb[0].mxu0
        %v2239 = vadd.f32 0.0, %v2238
        %v2240 = vpop.f32.mrb[0].mxu0
        %2241 = vmatprep.mubr.bf16.mxu0 0
        %2242 = vmatmul.mubr.bf16.gmra.mrb[0].mxu0 %v2129
        %v2243 = vpop.f32.mrb[0].mxu0
        %v2244 = vadd.f32 0.0, %v2243
        %v2245 = vpop.f32.mrb[0].mxu0
        %v2246 = vpop.f32.mrb[0].mxu0
        %v2247 = vadd.f32 0.0, %v2246
        %v2248 = vpop.f32.mrb[0].mxu0
        %2249 = vmatprep.mubr.bf16.mxu0 0
        %2250 = vmatmul.mubr.bf16.gmra.mrb[0].mxu0 %v2130
        %v2251 = vpop.f32.mrb[0].mxu0
        %v2252 = vadd.f32 0.0, %v2251
        %v2253 = vpop.f32.mrb[0].mxu0
        %v2254 = vpop.f32.mrb[0].mxu0
        %v2255 = vadd.f32 0.0, %v2254
        %v2256 = vpop.f32.mrb[0].mxu0
        %2257 = vmatprep.mubr.bf16.mxu0 0
        %2258 = vmatmul.mubr.bf16.gmra.mrb[0].mxu0 %v2131
        %v2259 = vpop.f32.mrb[0].mxu0
        %v2260 = vadd.f32 0.0, %v2259
        %v2261 = vpop.f32.mrb[0].mxu0
        %v2262 = vpop.f32.mrb[0].mxu0
        %v2263 = vadd.f32 0.0, %v2262
        %v2264 = vpop.f32.mrb[0].mxu0
        %2265 = vmatprep.mubr.bf16.mxu0 0
        %2266 = vmatmul.mubr.bf16.gmra.mrb[0].mxu0 %v2132
        %v2267 = vpop.f32.mrb[0].mxu0
        %v2268 = vadd.f32 0.0, %v2267
        %v2269 = vpop.f32.mrb[0].mxu0
        %v2270 = vpop.f32.mrb[0].mxu0
        %v2271 = vadd.f32 0.0, %v2270
        %v2272 = vpop.f32.mrb[0].mxu0
        %2273 = vmatprep.mubr.bf16.mxu0 0
        %2274 = vmatmul.mubr.bf16.gmra.mrb[0].mxu0 %v2133
        %v2275 = vpop.f32.mrb[0].mxu0
        %v2276 = vadd.f32 0.0, %v2275
        %v2277 = vpop.f32.mrb[0].mxu0
        %v2278 = vpop.f32.mrb[0].mxu0
        %v2279 = vadd.f32 0.0, %v2278
        %v2280 = vpop.f32.mrb[0].mxu0
        %2281 = vmatprep.mubr.bf16.mxu0 0
        %2282 = vmatmul.mubr.bf16.gmra.mrb[0].mxu0 %v2134
        %v2283 = vpop.f32.mrb[0].mxu0
        %v2284 = vadd.f32 0.0, %v2283
        %v2285 = vpop.f32.mrb[0].mxu0
        %v2286 = vpop.f32.mrb[0].mxu0
        %v2287 = vadd.f32 0.0, %v2286
        %v2288 = vpop.f32.mrb[0].mxu0
        %2289 = vmatprep.mubr.bf16.mxu0 0
        %2290 = vmatmul.mubr.bf16.gmra.mrb[0].mxu0 %v2135
        %v2291 = vpop.f32.mrb[0].mxu0
        %v2292 = vadd.f32 0.0, %v2291
        %v2293 = vpop.f32.mrb[0].mxu0
        %v2294 = vpop.f32.mrb[0].mxu0
        %v2295 = vadd.f32 0.0, %v2294
        %v2296 = vpop.f32.mrb[0].mxu0
        %2297 = vdwg.mxu0
        %v2314 = vunpack.c.l.b16 %v2015
        %v2315 = vunpack.c.l.b16 %v2016
        %v2316 = vunpack.c.l.b16 %v2017
        %v2317 = vunpack.c.l.b16 %v2018
        %v2318 = vunpack.c.l.b16 %v2019
        %v2319 = vunpack.c.l.b16 %v2020
        %v2320 = vunpack.c.l.b16 %v2021
        %v2321 = vunpack.c.l.b16 %v2022
        %v2322 = vunpack.c.l.b16 %v2023
        %v2323 = vunpack.c.l.b16 %v2024
        %v2324 = vunpack.c.l.b16 %v2025
        %v2325 = vunpack.c.l.b16 %v2026
        %v2326 = vunpack.c.l.b16 %v2027
        %v2327 = vunpack.c.l.b16 %v2028
        %v2328 = vunpack.c.l.b16 %v2029
        %v2329 = vunpack.c.l.b16 %v2030
        %v2330 = vpack.c.b16 %v2315, %v2314
        %v2331 = vpack.c.b16 %v2317, %v2316
        %v2332 = vpack.c.b16 %v2319, %v2318
        %v2333 = vpack.c.b16 %v2321, %v2320
        %v2334 = vpack.c.b16 %v2323, %v2322
        %v2335 = vpack.c.b16 %v2325, %v2324
        %v2336 = vpack.c.b16 %v2327, %v2326
        %v2337 = vpack.c.b16 %v2329, %v2328
        %2346 = vmatprep.subr.bf16.mxu0 0
        %2347 = vmatpush1.bf16.msra.mxu0 %v2330
        %2348 = vmatprep.subr.bf16.mxu0 0
        %2349 = vmatpush1.bf16.msra.mxu0 %v2331
        %2350 = vmatprep.subr.bf16.mxu0 0
        %2351 = vmatpush1.bf16.msra.mxu0 %v2332
        %2352 = vmatprep.subr.bf16.mxu0 0
        %2353 = vmatpush1.bf16.msra.mxu0 %v2333
        %2354 = vmatprep.subr.bf16.mxu0 0
        %2355 = vmatpush1.bf16.msra.mxu0 %v2334
        %2356 = vmatprep.subr.bf16.mxu0 0
        %2357 = vmatpush1.bf16.msra.mxu0 %v2335
        %2358 = vmatprep.subr.bf16.mxu0 0
        %2359 = vmatpush1.bf16.msra.mxu0 %v2336
        %2360 = vmatprep.subr.bf16.mxu0 0
        %2361 = vmatpush1.bf16.msra.mxu0 %v2337
        %2362 = vmatprep.subr.bf16.mxu0 0
        %2363 = vmatpush1.bf16.msra.mxu0 0
        %2364 = vmatprep.subr.bf16.mxu0 0
        %2365 = vmatpush1.bf16.msra.mxu0 0
        %2366 = vmatprep.subr.bf16.mxu0 0
        %2367 = vmatpush1.bf16.msra.mxu0 0
        %2368 = vmatprep.subr.bf16.mxu0 0
        %2369 = vmatpush1.bf16.msra.mxu0 0
        %2370 = vmatprep.subr.bf16.mxu0 0
        %2371 = vmatpush1.bf16.msra.mxu0 0
        %2372 = vmatprep.subr.bf16.mxu0 0
        %2373 = vmatpush1.bf16.msra.mxu0 0
        %2374 = vmatprep.subr.bf16.mxu0 0
        %2375 = vmatpush1.bf16.msra.mxu0 0
        %2376 = vmatprep.subr.bf16.mxu0 0
        %2377 = vmatpush1.bf16.msra.mxu0 0
        %2378 = vmatprep.mubr.bf16.mxu0 0
        %2379 = vmatmul.mubr.bf16.gmra.mrb[0].mxu0 %v2007
        %v2380 = vpop.f32.mrb[0].mxu0
        %v2381 = vadd.f32 %v2236, %v2380
        %v2382 = vpop.f32.mrb[0].mxu0
        %v2383 = vpop.f32.mrb[0].mxu0
        %v2384 = vadd.f32 %v2239, %v2383
        %v2385 = vpop.f32.mrb[0].mxu0
        %2386 = vmatprep.mubr.bf16.mxu0 0
        %2387 = vmatmul.mubr.bf16.gmra.mrb[0].mxu0 %v2008
        %v2388 = vpop.f32.mrb[0].mxu0
        %v2389 = vadd.f32 %v2244, %v2388
        %v2390 = vpop.f32.mrb[0].mxu0
        %v2391 = vpop.f32.mrb[0].mxu0
        %v2392 = vadd.f32 %v2247, %v2391
        %v2393 = vpop.f32.mrb[0].mxu0
        %2394 = vmatprep.mubr.bf16.mxu0 0
        %2395 = vmatmul.mubr.bf16.gmra.mrb[0].mxu0 %v2009
        %v2396 = vpop.f32.mrb[0].mxu0
        %v2397 = vadd.f32 %v2252, %v2396
        %v2398 = vpop.f32.mrb[0].mxu0
        %v2399 = vpop.f32.mrb[0].mxu0
        %v2400 = vadd.f32 %v2255, %v2399
        %v2401 = vpop.f32.mrb[0].mxu0
        %2402 = vmatprep.mubr.bf16.mxu0 0
        %2403 = vmatmul.mubr.bf16.gmra.mrb[0].mxu0 %v2010
        %v2404 = vpop.f32.mrb[0].mxu0
        %v2405 = vadd.f32 %v2260, %v2404
        %v2406 = vpop.f32.mrb[0].mxu0
        %v2407 = vpop.f32.mrb[0].mxu0
        %v2408 = vadd.f32 %v2263, %v2407
        %v2409 = vpop.f32.mrb[0].mxu0
        %2410 = vmatprep.mubr.bf16.mxu0 0
        %2411 = vmatmul.mubr.bf16.gmra.mrb[0].mxu0 %v2011
        %v2412 = vpop.f32.mrb[0].mxu0
        %v2413 = vadd.f32 %v2268, %v2412
        %v2414 = vpop.f32.mrb[0].mxu0
        %v2415 = vpop.f32.mrb[0].mxu0
        %v2416 = vadd.f32 %v2271, %v2415
        %v2417 = vpop.f32.mrb[0].mxu0
        %2418 = vmatprep.mubr.bf16.mxu0 0
        %2419 = vmatmul.mubr.bf16.gmra.mrb[0].mxu0 %v2012
        %v2420 = vpop.f32.mrb[0].mxu0
        %v2421 = vadd.f32 %v2276, %v2420
        %v2422 = vpop.f32.mrb[0].mxu0
        %v2423 = vpop.f32.mrb[0].mxu0
        %v2424 = vadd.f32 %v2279, %v2423
        %v2425 = vpop.f32.mrb[0].mxu0
        %2426 = vmatprep.mubr.bf16.mxu0 0
        %2427 = vmatmul.mubr.bf16.gmra.mrb[0].mxu0 %v2013
        %v2428 = vpop.f32.mrb[0].mxu0
        %v2429 = vadd.f32 %v2284, %v2428
        %v2430 = vpop.f32.mrb[0].mxu0
        %v2431 = vpop.f32.mrb[0].mxu0
        %v2432 = vadd.f32 %v2287, %v2431
        %v2433 = vpop.f32.mrb[0].mxu0
        %2434 = vmatprep.mubr.bf16.mxu0 0
        %2435 = vmatmul.mubr.bf16.gmra.mrb[0].mxu0 %v2014
        %v2436 = vpop.f32.mrb[0].mxu0
        %v2437 = vadd.f32 %v2292, %v2436
        %v2438 = vpop.f32.mrb[0].mxu0
        %v2439 = vpop.f32.mrb[0].mxu0
        %v2440 = vadd.f32 %v2295, %v2439
        %v2441 = vpop.f32.mrb[0].mxu0
        %2442 = vdwg.mxu0
        %vm2443 = vcmask 1045504
        %v2444 = vrot.slane %v1975, 2
        %v2445 = vrot.slane %v1991, 2
        %v2446 = vsel %vm2443, %v2444, %v2445
        %v2447 = vrot.slane %v1976, 2
        %v2448 = vrot.slane %v1992, 2
        %v2449 = vsel %vm2443, %v2447, %v2448
        %v2450 = vrot.slane %v1977, 2
        %v2451 = vrot.slane %v1993, 2
        %v2452 = vsel %vm2443, %v2450, %v2451
        %v2453 = vrot.slane %v1978, 2
        %v2454 = vrot.slane %v1994, 2
        %v2455 = vsel %vm2443, %v2453, %v2454
        %v2456 = vrot.slane %v1979, 2
        %v2457 = vrot.slane %v1995, 2
        %v2458 = vsel %vm2443, %v2456, %v2457
        %v2459 = vrot.slane %v1980, 2
        %v2460 = vrot.slane %v1996, 2
        %v2461 = vsel %vm2443, %v2459, %v2460
        %v2462 = vrot.slane %v1981, 2
        %v2463 = vrot.slane %v1997, 2
        %v2464 = vsel %vm2443, %v2462, %v2463
        %v2465 = vrot.slane %v1982, 2
        %v2466 = vrot.slane %v1998, 2
        %v2467 = vsel %vm2443, %v2465, %v2466
        %v2468 = vrot.slane %v1983, 2
        %v2469 = vrot.slane %v1999, 2
        %v2470 = vsel %vm2443, %v2468, %v2469
        %v2471 = vrot.slane %v1984, 2
        %v2472 = vrot.slane %v2000, 2
        %v2473 = vsel %vm2443, %v2471, %v2472
        %v2474 = vrot.slane %v1985, 2
        %v2475 = vrot.slane %v2001, 2
        %v2476 = vsel %vm2443, %v2474, %v2475
        %v2477 = vrot.slane %v1986, 2
        %v2478 = vrot.slane %v2002, 2
        %v2479 = vsel %vm2443, %v2477, %v2478
        %v2480 = vrot.slane %v1987, 2
        %v2481 = vrot.slane %v2003, 2
        %v2482 = vsel %vm2443, %v2480, %v2481
        %v2483 = vrot.slane %v1988, 2
        %v2484 = vrot.slane %v2004, 2
        %v2485 = vsel %vm2443, %v2483, %v2484
        %v2486 = vrot.slane %v1989, 2
        %v2487 = vrot.slane %v2005, 2
        %v2488 = vsel %vm2443, %v2486, %v2487
        %v2489 = vrot.slane %v1990, 2
        %v2490 = vrot.slane %v2006, 2
        %v2491 = vsel %vm2443, %v2489, %v2490
        %v2508 = vpack.c.bf16 %v2449, %v2446
        %v2509 = vpack.c.bf16 %v2455, %v2452
        %v2510 = vpack.c.bf16 %v2461, %v2458
        %v2511 = vpack.c.bf16 %v2467, %v2464
        %v2512 = vpack.c.bf16 %v2473, %v2470
        %v2513 = vpack.c.bf16 %v2479, %v2476
        %v2514 = vpack.c.bf16 %v2485, %v2482
        %v2515 = vpack.c.bf16 %v2491, %v2488
        %s2516 = scalar_lea.vmem [#allocation2], 128
        %v2517 = vld [vmem:[%s2516] sm:$0xf]
        %v2518 = vld [vmem:[%s2516 + $0x4] sm:$0xf]
        %v2519 = vld [vmem:[%s2516 + $0x8] sm:$0xf]
        %v2520 = vld [vmem:[%s2516 + $0xc] sm:$0xf]
        %v2521 = vld [vmem:[%s2516 + $0x10] sm:$0xf]
        %v2522 = vld [vmem:[%s2516 + $0x14] sm:$0xf]
        %v2523 = vld [vmem:[%s2516 + $0x18] sm:$0xf]
        %v2524 = vld [vmem:[%s2516 + $0x1c] sm:$0xf]
        %v2525 = vld [vmem:[%s2516 + $0x20] sm:$0xf]
        %v2526 = vld [vmem:[%s2516 + $0x24] sm:$0xf]
        %v2527 = vld [vmem:[%s2516 + $0x28] sm:$0xf]
        %v2528 = vld [vmem:[%s2516 + $0x2c] sm:$0xf]
        %v2529 = vld [vmem:[%s2516 + $0x30] sm:$0xf]
        %v2530 = vld [vmem:[%s2516 + $0x34] sm:$0xf]
        %v2531 = vld [vmem:[%s2516 + $0x38] sm:$0xf]
        %v2532 = vld [vmem:[%s2516 + $0x3c] sm:$0xf]
        %v2549 = vunpack.c.l.b16 %v2517
        %v2550 = vunpack.c.l.b16 %v2518
        %v2551 = vunpack.c.l.b16 %v2519
        %v2552 = vunpack.c.l.b16 %v2520
        %v2553 = vunpack.c.l.b16 %v2521
        %v2554 = vunpack.c.l.b16 %v2522
        %v2555 = vunpack.c.l.b16 %v2523
        %v2556 = vunpack.c.l.b16 %v2524
        %v2557 = vunpack.c.l.b16 %v2525
        %v2558 = vunpack.c.l.b16 %v2526
        %v2559 = vunpack.c.l.b16 %v2527
        %v2560 = vunpack.c.l.b16 %v2528
        %v2561 = vunpack.c.l.b16 %v2529
        %v2562 = vunpack.c.l.b16 %v2530
        %v2563 = vunpack.c.l.b16 %v2531
        %v2564 = vunpack.c.l.b16 %v2532
        %v2565 = vpack.c.b16 %v2550, %v2549
        %v2566 = vpack.c.b16 %v2552, %v2551
        %v2567 = vpack.c.b16 %v2554, %v2553
        %v2568 = vpack.c.b16 %v2556, %v2555
        %v2569 = vpack.c.b16 %v2558, %v2557
        %v2570 = vpack.c.b16 %v2560, %v2559
        %v2571 = vpack.c.b16 %v2562, %v2561
        %v2572 = vpack.c.b16 %v2564, %v2563
        %2581 = vmatprep.subr.bf16.mxu0 0
        %2582 = vmatpush1.bf16.msra.mxu0 %v2565
        %2583 = vmatprep.subr.bf16.mxu0 0
        %2584 = vmatpush1.bf16.msra.mxu0 %v2566
        %2585 = vmatprep.subr.bf16.mxu0 0
        %2586 = vmatpush1.bf16.msra.mxu0 %v2567
        %2587 = vmatprep.subr.bf16.mxu0 0
        %2588 = vmatpush1.bf16.msra.mxu0 %v2568
        %2589 = vmatprep.subr.bf16.mxu0 0
        %2590 = vmatpush1.bf16.msra.mxu0 %v2569
        %2591 = vmatprep.subr.bf16.mxu0 0
        %2592 = vmatpush1.bf16.msra.mxu0 %v2570
        %2593 = vmatprep.subr.bf16.mxu0 0
        %2594 = vmatpush1.bf16.msra.mxu0 %v2571
        %2595 = vmatprep.subr.bf16.mxu0 0
        %2596 = vmatpush1.bf16.msra.mxu0 %v2572
        %2597 = vmatprep.subr.bf16.mxu0 0
        %2598 = vmatpush1.bf16.msra.mxu0 0
        %2599 = vmatprep.subr.bf16.mxu0 0
        %2600 = vmatpush1.bf16.msra.mxu0 0
        %2601 = vmatprep.subr.bf16.mxu0 0
        %2602 = vmatpush1.bf16.msra.mxu0 0
        %2603 = vmatprep.subr.bf16.mxu0 0
        %2604 = vmatpush1.bf16.msra.mxu0 0
        %2605 = vmatprep.subr.bf16.mxu0 0
        %2606 = vmatpush1.bf16.msra.mxu0 0
        %2607 = vmatprep.subr.bf16.mxu0 0
        %2608 = vmatpush1.bf16.msra.mxu0 0
        %2609 = vmatprep.subr.bf16.mxu0 0
        %2610 = vmatpush1.bf16.msra.mxu0 0
        %2611 = vmatprep.subr.bf16.mxu0 0
        %2612 = vmatpush1.bf16.msra.mxu0 0
        %2613 = vmatprep.mubr.bf16.mxu0 0
        %2614 = vmatmul.mubr.bf16.gmra.mrb[0].mxu0 %v2508
        %v2615 = vpop.f32.mrb[0].mxu0
        %v2616 = vadd.f32 0.0, %v2615
        %v2617 = vpop.f32.mrb[0].mxu0
        %v2618 = vpop.f32.mrb[0].mxu0
        %v2619 = vadd.f32 0.0, %v2618
        %v2620 = vpop.f32.mrb[0].mxu0
        %2621 = vmatprep.mubr.bf16.mxu0 0
        %2622 = vmatmul.mubr.bf16.gmra.mrb[0].mxu0 %v2509
        %v2623 = vpop.f32.mrb[0].mxu0
        %v2624 = vadd.f32 0.0, %v2623
        %v2625 = vpop.f32.mrb[0].mxu0
        %v2626 = vpop.f32.mrb[0].mxu0
        %v2627 = vadd.f32 0.0, %v2626
        %v2628 = vpop.f32.mrb[0].mxu0
        %2629 = vmatprep.mubr.bf16.mxu0 0
        %2630 = vmatmul.mubr.bf16.gmra.mrb[0].mxu0 %v2510
        %v2631 = vpop.f32.mrb[0].mxu0
        %v2632 = vadd.f32 0.0, %v2631
        %v2633 = vpop.f32.mrb[0].mxu0
        %v2634 = vpop.f32.mrb[0].mxu0
        %v2635 = vadd.f32 0.0, %v2634
        %v2636 = vpop.f32.mrb[0].mxu0
        %2637 = vmatprep.mubr.bf16.mxu0 0
        %2638 = vmatmul.mubr.bf16.gmra.mrb[0].mxu0 %v2511
        %v2639 = vpop.f32.mrb[0].mxu0
        %v2640 = vadd.f32 0.0, %v2639
        %v2641 = vpop.f32.mrb[0].mxu0
        %v2642 = vpop.f32.mrb[0].mxu0
        %v2643 = vadd.f32 0.0, %v2642
        %v2644 = vpop.f32.mrb[0].mxu0
        %2645 = vmatprep.mubr.bf16.mxu0 0
        %2646 = vmatmul.mubr.bf16.gmra.mrb[0].mxu0 %v2512
        %v2647 = vpop.f32.mrb[0].mxu0
        %v2648 = vadd.f32 0.0, %v2647
        %v2649 = vpop.f32.mrb[0].mxu0
        %v2650 = vpop.f32.mrb[0].mxu0
        %v2651 = vadd.f32 0.0, %v2650
        %v2652 = vpop.f32.mrb[0].mxu0
        %2653 = vmatprep.mubr.bf16.mxu0 0
        %2654 = vmatmul.mubr.bf16.gmra.mrb[0].mxu0 %v2513
        %v2655 = vpop.f32.mrb[0].mxu0
        %v2656 = vadd.f32 0.0, %v2655
        %v2657 = vpop.f32.mrb[0].mxu0
        %v2658 = vpop.f32.mrb[0].mxu0
        %v2659 = vadd.f32 0.0, %v2658
        %v2660 = vpop.f32.mrb[0].mxu0
        %2661 = vmatprep.mubr.bf16.mxu0 0
        %2662 = vmatmul.mubr.bf16.gmra.mrb[0].mxu0 %v2514
        %v2663 = vpop.f32.mrb[0].mxu0
        %v2664 = vadd.f32 0.0, %v2663
        %v2665 = vpop.f32.mrb[0].mxu0
        %v2666 = vpop.f32.mrb[0].mxu0
        %v2667 = vadd.f32 0.0, %v2666
        %v2668 = vpop.f32.mrb[0].mxu0
        %2669 = vmatprep.mubr.bf16.mxu0 0
        %2670 = vmatmul.mubr.bf16.gmra.mrb[0].mxu0 %v2515
        %v2671 = vpop.f32.mrb[0].mxu0
        %v2672 = vadd.f32 0.0, %v2671
        %v2673 = vpop.f32.mrb[0].mxu0
        %v2674 = vpop.f32.mrb[0].mxu0
        %v2675 = vadd.f32 0.0, %v2674
        %v2676 = vpop.f32.mrb[0].mxu0
        %2677 = vdwg.mxu0
        %v2678 = vadd.f32 %v2381, %v2616
        %v2679 = vadd.f32 %v2384, %v2619
        %v2680 = vadd.f32 %v2389, %v2624
        %v2681 = vadd.f32 %v2392, %v2627
        %v2682 = vadd.f32 %v2397, %v2632
        %v2683 = vadd.f32 %v2400, %v2635
        %v2684 = vadd.f32 %v2405, %v2640
        %v2685 = vadd.f32 %v2408, %v2643
        %v2686 = vadd.f32 %v2413, %v2648
        %v2687 = vadd.f32 %v2416, %v2651
        %v2688 = vadd.f32 %v2421, %v2656
        %v2689 = vadd.f32 %v2424, %v2659
        %v2690 = vadd.f32 %v2429, %v2664
        %v2691 = vadd.f32 %v2432, %v2667
        %v2692 = vadd.f32 %v2437, %v2672
        %v2693 = vadd.f32 %v2440, %v2675
        %v2694 = vadd.f32 %v2678, %v523
        %v2695 = vadd.f32 %v2679, %v526
        %v2696 = vadd.f32 %v2680, %v531
        %v2697 = vadd.f32 %v2681, %v534
        %v2698 = vadd.f32 %v2682, %v539
        %v2699 = vadd.f32 %v2683, %v542
        %v2700 = vadd.f32 %v2684, %v547
        %v2701 = vadd.f32 %v2685, %v550
        %v2702 = vadd.f32 %v2686, %v555
        %v2703 = vadd.f32 %v2687, %v558
        %v2704 = vadd.f32 %v2688, %v563
        %v2705 = vadd.f32 %v2689, %v566
        %v2706 = vadd.f32 %v2690, %v571
        %v2707 = vadd.f32 %v2691, %v574
        %v2708 = vadd.f32 %v2692, %v579
        %v2709 = vadd.f32 %v2693, %v582
        %v2710 = vld [vmem:[%s5] sm:$0x1]
        %v2712 = vlaneseq
        %v2713 = vshrl.u32 %v2712, 7
        %v2714 = vsub.s32 0, %v2713
        %v2715 = vrot.slane %v2710, %v2714
        %v2717 = vadd.f32 %v2694, %v2715
        %v2718 = vadd.f32 %v2695, %v2715
        %v2719 = vadd.f32 %v2696, %v2715
        %v2720 = vadd.f32 %v2697, %v2715
        %v2721 = vadd.f32 %v2698, %v2715
        %v2722 = vadd.f32 %v2699, %v2715
        %v2723 = vadd.f32 %v2700, %v2715
        %v2724 = vadd.f32 %v2701, %v2715
        %v2725 = vadd.f32 %v2702, %v2715
        %v2726 = vadd.f32 %v2703, %v2715
        %v2727 = vadd.f32 %v2704, %v2715
        %v2728 = vadd.f32 %v2705, %v2715
        %v2729 = vadd.f32 %v2706, %v2715
        %v2730 = vadd.f32 %v2707, %v2715
        %v2731 = vadd.f32 %v2708, %v2715
        %v2732 = vadd.f32 %v2709, %v2715
        %v2733 = vmax.f32 %v2717, 0.0
        %v2734 = vmax.f32 %v2718, 0.0
        %v2735 = vmax.f32 %v2719, 0.0
        %v2736 = vmax.f32 %v2720, 0.0
        %v2737 = vmax.f32 %v2721, 0.0
        %v2738 = vmax.f32 %v2722, 0.0
        %v2739 = vmax.f32 %v2723, 0.0
        %v2740 = vmax.f32 %v2724, 0.0
        %v2741 = vmax.f32 %v2725, 0.0
        %v2742 = vmax.f32 %v2726, 0.0
        %v2743 = vmax.f32 %v2727, 0.0
        %v2744 = vmax.f32 %v2728, 0.0
        %v2745 = vmax.f32 %v2729, 0.0
        %v2746 = vmax.f32 %v2730, 0.0
        %v2747 = vmax.f32 %v2731, 0.0
        %v2748 = vmax.f32 %v2732, 0.0
        %2749 = vst [vmem:[%s259] sm:$0xff] %v2733
        %2750 = vst [vmem:[%s259 + $0x8] sm:$0xff] %v2734
        %2751 = vst [vmem:[%s259 + $0x10] sm:$0xff] %v2735
        %2752 = vst [vmem:[%s259 + $0x18] sm:$0xff] %v2736
        %2753 = vst [vmem:[%s259 + $0x20] sm:$0xff] %v2737
        %2754 = vst [vmem:[%s259 + $0x28] sm:$0xff] %v2738
        %2755 = vst [vmem:[%s259 + $0x30] sm:$0xff] %v2739
        %2756 = vst [vmem:[%s259 + $0x38] sm:$0xff] %v2740
        %2757 = vst [vmem:[%s259 + $0x40] sm:$0xff] %v2741
        %2758 = vst [vmem:[%s259 + $0x48] sm:$0xff] %v2742
        %2759 = vst [vmem:[%s259 + $0x50] sm:$0xff] %v2743
        %2760 = vst [vmem:[%s259 + $0x58] sm:$0xff] %v2744
        %2761 = vst [vmem:[%s259 + $0x60] sm:$0xff] %v2745
        %2762 = vst [vmem:[%s259 + $0x68] sm:$0xff] %v2746
        %2763 = vst [vmem:[%s259 + $0x70] sm:$0xff] %v2747
        %2764 = vst [vmem:[%s259 + $0x78] sm:$0xff] %v2748
        %s2765 = sand.u32 %s160, 1
        %s2766 = scalar_lea.sflag [#allocation4], %s2765
        %s2767 = sand.u32 %s160, 1
        %s2768 = smul.addr %s2767, 128
        %s2769 = scalar_lea.vmem [#allocation5], %s2768
        // Predicated region
        $region49: #{tpu_custom_call.1} parent=43 // pred_check
          %p2770 = pneg %p170
        $region50: #{tpu_custom_call.1} parent=43 // pred_check_branch
          %2772 = sbr.rel (%p2770) target = $region52
        $region51: #{tpu_custom_call.1} parent=43 // pred_region
          %s2774 = ssub.s32 2048, 2048
          %2775 = vsyncadd %s2766, %s2774
          %s2776 = smul.addr %s21, 16
          %s2777 = smul.addr %s2776, 128
          %s2778 = scalar_lea.hbm %s6, %s2777
          %s2779 = sshll.u32 %s2769, 4
          %s2780 = int_to_ptr.vmem [resolvable:$true] %s2779
          %2785 = dma.vmem_to_hbm [thread:$0]  %s2780, 2048, %s2778, %s2766, 128, 128, 8
        $region52: #{tpu_custom_call.1} parent=43 // pred_fallthru
          _
      $region44: #{tpu_custom_call.1} parent=5 // pred_fallthru
        _
      %p2786 = scmp.le.s32.totalorder 2, %s16
      // Predicated region
      $region53: #{tpu_custom_call.1} parent=5 // pred_check
        %p2787 = pneg %p2786
      $region54: #{tpu_custom_call.1} parent=5 // pred_check_branch
        %2789 = sbr.rel (%p2787) target = $region56
      $region55: #{tpu_custom_call.1} parent=5 // pred_region
        %s2790 = ssub.s32 %s16, 2
        // Predicated region
        $region57: #{tpu_custom_call.1} parent=55 // pred_check
          %p2791 = pneg %p176
        $region58: #{tpu_custom_call.1} parent=55 // pred_check_branch
          %2793 = sbr.rel (%p2791) target = $region60
        $region59: #{tpu_custom_call.1} parent=55 // pred_region
          %s2794 = sand.u32 %s161, 1
          %s2795 = scalar_lea.sflag [#allocation4], %s2794
          %s2796 = sand.u32 %s161, 1
          %s2797 = smul.addr %s2796, 128
          %s2798 = scalar_lea.vmem [#allocation5], %s2797
          %2799 = dma.done %s2795, 2048
        $region60: #{tpu_custom_call.1} parent=55 // pred_fallthru
          _
      $region56: #{tpu_custom_call.1} parent=5 // pred_fallthru
        _
    $region6: #{tpu_custom_call.1} parent=1 // loop_footer
      %s20 = sadd.s32 1, %s16
    $region7: #{tpu_custom_call.1} parent=1 // loop_footer_branch
      %15 = sbr.rel target = $region3
    $region8: #{tpu_custom_call.1} parent=1 // loop_exit
      _
    %2800 = vsyncpa [#allocation3], 1
    %s2801 = scalar_lea.sflag [#allocation3], 1
    %2802 = vsyncpa %s2801, 1
    %2803 = vsyncpa [#allocation4], 1
    %s2804 = scalar_lea.sflag [#allocation4], 1
    %2805 = vsyncpa %s2804, 1

</llo_original>
